<compile_context>
chip_gen: v6e
topology: v6e:2x2x1
jax: 0.10.0
libtpu: 0.0.40
codegen_flags: <defaults>
</compile_context>

<pallas_src>
import functools

import jax
import jax.numpy as jnp
from jax.experimental import pallas as pl
from jax.experimental.pallas import tpu as pltpu


def _encoder_mlp_kernel(x_ref, *refs, layer_widths, output_dim):
    """refs = (w_0, ..., w_readout, bias_pack_ref, out_ref)."""
    w_refs = refs[:-2]
    b_ref = refs[-2]          # (n_layers, max_width) f32, padded with zeros
    out_ref = refs[-1]        # (TILE_M, 2*output_dim) f32

    n_layers = len(w_refs)
    h = x_ref[...]            # (TILE_M, K_pad) bf16
    y = None
    for li in range(n_layers):
        width = layer_widths[li]
        bias = b_ref[li:li + 1, :width]                 # static (1, width) slice
        y = jnp.dot(h, w_refs[li][...],
                    preferred_element_type=jnp.float32) + bias
        if li < n_layers - 1:                           # hidden layers: ReLU
            h = jnp.maximum(y, 0.0).astype(jnp.bfloat16)

    # y: (TILE_M, 2*d) readout.  Lanes [0, d) -> mean (identity),
    # lanes [d, 2d) -> std = 1e-6 + exp(0.5 * logvar).  Pure elementwise
    # select: no cross-lane move, one full-tile store.
    lane = jax.lax.broadcasted_iota(jnp.int32, y.shape, dimension=1)
    out_ref[...] = jnp.where(lane < output_dim, y, 1e-6 + jnp.exp(0.5 * y))


def encoder_mlp_forward(x, params, output_dim, *, tile_m=128):
    """x: anything flattening to (B, 784); params: list of (W(in,out), b(out))."""
    d = output_dim
    x2d = x.reshape(-1, 28 * 28).astype(jnp.float32)
    batch = x2d.shape[0]

    # Pad K: 784 -> 896 (= 7 * 128), pad batch -> multiple of tile_m.
    k_pad = 896
    padded_b = ((batch + tile_m - 1) // tile_m) * tile_m
    x_pad = jnp.zeros((padded_b, k_pad), jnp.float32).at[:batch, :784].set(x2d)
    x_bf = x_pad.astype(jnp.bfloat16)

    # Weights (in, out) layout, bf16 for the MXU; W0 rows padded 784 -> 896.
    ws, widths = [], []
    for idx, (w, _) in enumerate(params):
        w = w.astype(jnp.float32)
        if idx == 0:
            w = jnp.zeros((k_pad, w.shape[1]), jnp.float32).at[:w.shape[0]].set(w)
        ws.append(w.astype(jnp.bfloat16))
        widths.append(w.shape[1])

    # Pack all biases (f32) into one buffer -> single parameter DMA.
    max_w = max(widths)
    b_packed = jnp.zeros((len(params), max_w), jnp.float32)
    for i, (_, b) in enumerate(params):
        b_packed = b_packed.at[i, : b.shape[0]].set(b.astype(jnp.float32))

    grid_m = padded_b // tile_m

    in_specs = [pl.BlockSpec((tile_m, k_pad), lambda i: (i, 0))]      # x tiles stream
    for w in ws:
        in_specs.append(pl.BlockSpec(w.shape, lambda i: (0, 0)))      # resident
    in_specs.append(pl.BlockSpec(b_packed.shape, lambda i: (0, 0)))   # resident

    out_spec = pl.BlockSpec((tile_m, 2 * d), lambda i: (i, 0))
    out_shape = jax.ShapeDtypeStruct((padded_b, 2 * d), jnp.float32)

    kernel = functools.partial(
        _encoder_mlp_kernel, layer_widths=tuple(widths), output_dim=d
    )

    y = pl.pallas_call(
        kernel,
        grid=(grid_m,),
        in_specs=in_specs,
        out_specs=out_spec,
        out_shape=out_shape,
        compiler_params=pltpu.CompilerParams(
            dimension_semantics=("parallel",)
        ),
    )(x_bf, *ws, b_packed)

    y = y[:batch]
    mean = y[:, :d]
    stdev = y[:, d:]
    return mean, stdev


def init_params(key, input_dim, hidden_dims, output_dim):
    """Deterministic init mirroring nn.Linear shapes, stored as (in, out)."""
    dims = [input_dim] + list(hidden_dims) + [2 * output_dim]
    params = []
    for i in range(len(dims) - 1):
        key, kw, kb = jax.random.split(key, 3)
        bound = 1.0 / jnp.sqrt(dims[i])
        w = jax.random.uniform(kw, (dims[i], dims[i + 1]), jnp.float32, -bound, bound)
        b = jax.random.uniform(kb, (dims[i + 1],), jnp.float32, -bound, bound)
        params.append((w, b))
    return params


def _reference_forward(x, params, output_dim):
    """Pure-JAX reference with the same bf16-input / f32-accum matmuls."""
    h = x.reshape(-1, 28 * 28).astype(jnp.float32)
    for w, b in params[:-1]:
        h = jnp.dot(h.astype(jnp.bfloat16), w.astype(jnp.bfloat16),
                    preferred_element_type=jnp.float32) + b
        h = jnp.maximum(h, 0.0)
    wr, br = params[-1]
    y = jnp.dot(h.astype(jnp.bfloat16), wr.astype(jnp.bfloat16),
                preferred_element_type=jnp.float32) + br
    return y[:, :output_dim], 1e-6 + jnp.exp(0.5 * y[:, output_dim:])


if __name__ == "__main__":
    key = jax.random.PRNGKey(0)

    input_dim = 28 * 28          # forced by X.view(-1, 28*28)
    hidden_dims = [256, 128]
    output_dim = 8
    batch = 200                  # pads to 256 -> batch grid of 2 tiles

    k_x, k_p = jax.random.split(key)
    # NCHW MNIST-like input, as the PyTorch module expects before .view().
    x = jax.random.normal(k_x, (batch, 1, 28, 28), dtype=jnp.float32)
    params = init_params(k_p, input_dim, hidden_dims, output_dim)

    mean, stdev = encoder_mlp_forward(x, params, output_dim)
    jax.block_until_ready((mean, stdev))

    mean_ref, stdev_ref = _reference_forward(x, params, output_dim)
    assert mean.shape == (batch, output_dim) and stdev.shape == (batch, output_dim)
    assert jnp.allclose(mean, mean_ref, rtol=2e-3, atol=2e-3), "mean mismatch"
    assert jnp.allclose(stdev, stdev_ref, rtol=2e-3, atol=2e-3), "stdev mismatch"

    print("KERNEL_OK")
</pallas_src>

<mosaic_0001>
module attributes {stable_mosaic.version = 11 : i64} {
  func.func @_encoder_mlp_kernel(%arg0: i32, %arg1: memref<128x896xbf16, #tpu.memory_space<vmem>>, %arg2: memref<896x256xbf16, #tpu.memory_space<vmem>>, %arg3: memref<256x128xbf16, #tpu.memory_space<vmem>>, %arg4: memref<128x16xbf16, #tpu.memory_space<vmem>>, %arg5: memref<3x256xf32, #tpu.memory_space<vmem>>, %arg6: memref<128x16xf32, #tpu.memory_space<vmem>>) attributes {dimension_semantics = [#tpu.dimension_semantics<parallel>], iteration_bounds = array<i64: 2>, scalar_prefetch = 0 : i64, scratch_operands = 0 : i64, tpu.core_type = #tpu.core_type<tc>, window_params = [{transform_indices = @transform_0, window_bounds = array<i64: 128, 896>}, {pipeline_mode = #tpu.pipeline_mode<synchronous>, transform_indices = @transform_1, window_bounds = array<i64: 896, 256>}, {pipeline_mode = #tpu.pipeline_mode<synchronous>, transform_indices = @transform_2, window_bounds = array<i64: 256, 128>}, {pipeline_mode = #tpu.pipeline_mode<synchronous>, transform_indices = @transform_3, window_bounds = array<i64: 128, 16>}, {pipeline_mode = #tpu.pipeline_mode<synchronous>, transform_indices = @transform_4, window_bounds = array<i64: 3, 256>}, {transform_indices = @transform_5, window_bounds = array<i64: 128, 16>}]} {
    %c0 = arith.constant 0 : index
    %c0_0 = arith.constant 0 : index
    %0 = vector.load %arg1[%c0, %c0_0] : memref<128x896xbf16, #tpu.memory_space<vmem>>, vector<128x896xbf16>
    %c0_1 = arith.constant 0 : index
    %c0_2 = arith.constant 0 : index
    %1 = vector.load %arg5[%c0_1, %c0_2] : memref<3x256xf32, #tpu.memory_space<vmem>>, vector<1x256xf32>
    %c0_3 = arith.constant 0 : index
    %c0_4 = arith.constant 0 : index
    %2 = vector.load %arg2[%c0_3, %c0_4] : memref<896x256xbf16, #tpu.memory_space<vmem>>, vector<896x256xbf16>
    %cst = arith.constant dense<0.000000e+00> : vector<128x256xf32>
    %3 = tpu.matmul %0, %2, %cst {dimension_numbers = #tpu.dot_dimension_numbers<[1], [0], [0], [1], [0, 0, 1, 1], [], []>} : vector<128x896xbf16>, vector<896x256xbf16>, vector<128x256xf32> -> vector<128x256xf32>
    %4 = vector.broadcast %1 : vector<1x256xf32> to vector<128x256xf32>
    %5 = arith.addf %3, %4 : vector<128x256xf32>
    %cst_5 = arith.constant 0.000000e+00 : f32
    %6 = vector.broadcast %cst_5 : f32 to vector<128x256xf32>
    %7 = arith.maximumf %5, %6 : vector<128x256xf32>
    %8 = arith.truncf %7 : vector<128x256xf32> to vector<128x256xbf16>
    %c1 = arith.constant 1 : index
    %c0_6 = arith.constant 0 : index
    %9 = vector.load %arg5[%c1, %c0_6] : memref<3x256xf32, #tpu.memory_space<vmem>>, vector<1x128xf32>
    %c0_7 = arith.constant 0 : index
    %c0_8 = arith.constant 0 : index
    %10 = vector.load %arg3[%c0_7, %c0_8] : memref<256x128xbf16, #tpu.memory_space<vmem>>, vector<256x128xbf16>
    %cst_9 = arith.constant dense<0.000000e+00> : vector<128x128xf32>
    %11 = tpu.matmul %8, %10, %cst_9 {dimension_numbers = #tpu.dot_dimension_numbers<[1], [0], [0], [1], [0, 0, 1, 1], [], []>} : vector<128x256xbf16>, vector<256x128xbf16>, vector<128x128xf32> -> vector<128x128xf32>
    %12 = vector.broadcast %9 : vector<1x128xf32> to vector<128x128xf32>
    %13 = arith.addf %11, %12 : vector<128x128xf32>
    %cst_10 = arith.constant 0.000000e+00 : f32
    %14 = vector.broadcast %cst_10 : f32 to vector<128x128xf32>
    %15 = arith.maximumf %13, %14 : vector<128x128xf32>
    %16 = arith.truncf %15 : vector<128x128xf32> to vector<128x128xbf16>
    %c2 = arith.constant 2 : index
    %c0_11 = arith.constant 0 : index
    %17 = vector.load %arg5[%c2, %c0_11] : memref<3x256xf32, #tpu.memory_space<vmem>>, vector<1x16xf32>
    %c0_12 = arith.constant 0 : index
    %c0_13 = arith.constant 0 : index
    %18 = vector.load %arg4[%c0_12, %c0_13] : memref<128x16xbf16, #tpu.memory_space<vmem>>, vector<128x16xbf16>
    %cst_14 = arith.constant dense<0.000000e+00> : vector<128x16xf32>
    %19 = tpu.matmul %16, %18, %cst_14 {dimension_numbers = #tpu.dot_dimension_numbers<[1], [0], [0], [1], [0, 0, 1, 1], [], []>} : vector<128x128xbf16>, vector<128x16xbf16>, vector<128x16xf32> -> vector<128x16xf32>
    %20 = vector.broadcast %17 : vector<1x16xf32> to vector<128x16xf32>
    %21 = arith.addf %19, %20 : vector<128x16xf32>
    %22 = tpu.iota {dimensions = array<i32: 1>} : vector<128x16xi32>
    %c8_i32 = arith.constant 8 : i32
    %23 = vector.broadcast %c8_i32 : i32 to vector<128x16xi32>
    %24 = arith.cmpi slt, %22, %23 : vector<128x16xi32>
    %cst_15 = arith.constant 5.000000e-01 : f32
    %25 = vector.broadcast %cst_15 : f32 to vector<128x16xf32>
    %26 = arith.mulf %25, %21 : vector<128x16xf32>
    %27 = math.exp %26 : vector<128x16xf32>
    %cst_16 = arith.constant 9.99999997E-7 : f32
    %28 = vector.broadcast %cst_16 : f32 to vector<128x16xf32>
    %29 = arith.addf %28, %27 : vector<128x16xf32>
    %30 = arith.select %24, %21, %29 : vector<128x16xi1>, vector<128x16xf32>
    %c0_17 = arith.constant 0 : index
    %c0_18 = arith.constant 0 : index
    %31 = vector.load %arg6[%c0_17, %c0_18] : memref<128x16xf32, #tpu.memory_space<vmem>>, vector<128x16xf32>
    tpu.vector_store %arg6[%c0_17, %c0_18], %30 {strides = array<i32>} : memref<128x16xf32, #tpu.memory_space<vmem>>, vector<128x16xf32>,
    return
  }
  func.func @transform_0(%arg0: i32) -> (i32, i32) {
    %c0_i32 = arith.constant 0 : i32
    %c0_i32_0 = arith.constant 0 : i32
    return %arg0, %c0_i32 : i32, i32
  }
  func.func @transform_1(%arg0: i32) -> (i32, i32) {
    %c0_i32 = arith.constant 0 : i32
    %c0_i32_0 = arith.constant 0 : i32
    %c0_i32_1 = arith.constant 0 : i32
    return %c0_i32, %c0_i32_0 : i32, i32
  }
  func.func @transform_2(%arg0: i32) -> (i32, i32) {
    %c0_i32 = arith.constant 0 : i32
    %c0_i32_0 = arith.constant 0 : i32
    %c0_i32_1 = arith.constant 0 : i32
    return %c0_i32, %c0_i32_0 : i32, i32
  }
  func.func @transform_3(%arg0: i32) -> (i32, i32) {
    %c0_i32 = arith.constant 0 : i32
    %c0_i32_0 = arith.constant 0 : i32
    %c0_i32_1 = arith.constant 0 : i32
    return %c0_i32, %c0_i32_0 : i32, i32
  }
  func.func @transform_4(%arg0: i32) -> (i32, i32) {
    %c0_i32 = arith.constant 0 : i32
    %c0_i32_0 = arith.constant 0 : i32
    %c0_i32_1 = arith.constant 0 : i32
    return %c0_i32, %c0_i32_0 : i32, i32
  }
  func.func @transform_5(%arg0: i32) -> (i32, i32) {
    %c0_i32 = arith.constant 0 : i32
    %c0_i32_0 = arith.constant 0 : i32
    return %arg0, %c0_i32 : i32, i32
  }
}

</mosaic_0001>

<llo_original>
// kernel: tpu_custom_call.1
$region0: #{tpu_custom_call.1}
  #allocation0 [shape = 'u32[]', space=smem, size = 0x4, offset = 0x4, fixed_abs, tag = 'smem constant byte address 0x4 - core index']
  #allocation1 [shape = 'u32[144,128]{1,0:T(1,128)}', space=vmem, size = 0x12000, scoped, tag = 'internal scratch']
  %s0 = inlined_call_operand.hbm [shape: bf16[256,896], index: 0, kind: input, shape index: {}]
  %s1 = inlined_call_operand.hbm [shape: bf16[896,256], index: 1, kind: input, shape index: {}]
  %s2 = inlined_call_operand.hbm [shape: bf16[256,128], index: 2, kind: input, shape index: {}]
  %s3 = inlined_call_operand.vmem [shape: bf16[128,16], index: 3, kind: input, shape index: {}]
  %s4 = inlined_call_operand.vmem [shape: f32[3,256], index: 4, kind: input, shape index: {}]
  %s5 = inlined_call_operand.vmem [shape: f32[256,16], index: 5, kind: output, shape index: {}]
  %s6 = sld [smem:[#allocation0]]
  $region65: #{tpu_custom_call.1} parent=0
    _
  %s8 = ssub.s32 1, %s6
  %s9 = scalar_select 0, %s8, %s6
  $region1: #{tpu_custom_call.1} parent=0
    #allocation2 [shape = 'u8[458752]{0}', space=vmem, size = 0x70000, scoped, tag = 'input window, operand 0']
    #allocation3 [shape = 's32[2]{0}', space=sflag, size = 0x8, scoped, tag = 'scoped memory for tpu_custom_call.1']
    #allocation4 [shape = 'u8[458752]{0}', space=vmem, size = 0x70000, scoped, tag = 'input window, operand 1, single buffered']
    #allocation5 [shape = 's32[1]{0}', space=sflag, size = 0x4, scoped, tag = 'scoped memory for tpu_custom_call.1']
    #allocation6 [shape = 'u8[65536]{0}', space=vmem, size = 0x10000, scoped, tag = 'input window, operand 2, single buffered']
    %10 = vsyncpa [#allocation3], 0
    %s11 = scalar_lea.sflag [#allocation3], 1
    %12 = vsyncpa %s11, 0
    %13 = vsyncpa [#allocation5], 0
    loop: start=0, step=1, limit=4
    $region2: #{tpu_custom_call.1} parent=1 // loop_pre_header
      _
    $region3: #{tpu_custom_call.1} parent=1 // loop_header
      %s15 = sphi 0, %s19
      %p16 = scmp.ge.s32.totalorder %s15, 4
      %s25 = sphi 0, %s27
      %s28 = sphi 0, %s25
      %s29 = sphi 0, %s28
      %s45 = sphi 0, %s29
      %s49 = sphi 0, %s49
      %s51 = sphi 0, %s49
      %s52 = sphi 0, %s51
      %s66 = sphi 0, %s52
      %s70 = sphi 0, %s70
      %s72 = sphi 0, %s70
      %s73 = sphi 0, %s72
      %s87 = sphi 0, %s73
      %s91 = sphi 0, %s91
      %s93 = sphi 0, %s91
      %s94 = sphi 0, %s93
      %s108 = sphi 0, %s94
      %s112 = sphi 0, %s112
      %s114 = sphi 0, %s112
      %s115 = sphi 0, %s114
      %s129 = sphi 0, %s115
      %s135 = sphi 0, %s137
      %s138 = sphi 0, %s135
      %s139 = sphi 0, %s138
      %s155 = sphi 0, %s139
    $region4: #{tpu_custom_call.1} parent=1 // loop_header_branch
      %18 = sbr.rel (%p16) target = $region8
    $region5: #{tpu_custom_call.1} parent=1 // loop_body
      %s20 = ssub.s32 %s15, 1
      %s21 = ssub.s32 %s15, 2
      %s22 = sadd.s32 %s15, 1
      %s23 = ssub.s32 %s15, %s22
      %p24 = scmp.eq.s32.totalorder %s23, 0
      %s26 = sadd.s32 %s25, 1
      %s27 = scalar_select %p24, %s25, %s26
      %p30 = pneg %p24
      %p31 = scmp.eq.s32.totalorder %s15, 1
      %p32 = por %p30, %p31
      %p33 = scmp.ne.s32.totalorder %s25, %s28
      %p34 = scmp.eq.s32.totalorder %s15, 0
      %p35 = por %p33, %p34
      %p36 = scmp.ne.s32.totalorder %s25, %s28
      %p37 = scmp.eq.s32.totalorder %s20, 1
      %p38 = por %p36, %p37
      %p39 = scmp.ne.s32.totalorder %s28, %s29
      %p40 = scmp.eq.s32.totalorder %s20, 0
      %p41 = por %p39, %p40
      %p42 = scmp.ne.s32.totalorder %s28, %s29
      %p43 = scmp.eq.s32.totalorder %s21, 1
      %p44 = por %p42, %p43
      %p46 = scmp.ne.s32.totalorder %s29, %s45
      %p47 = scmp.eq.s32.totalorder %s21, 0
      %p48 = por %p46, %p47
      %s50 = sadd.s32 %s49, 1
      %p53 = scmp.eq.s32.totalorder %s15, 1
      %p54 = scmp.ne.s32.totalorder %s49, %s51
      %p55 = scmp.eq.s32.totalorder %s15, 0
      %p56 = por %p54, %p55
      %p57 = scmp.ne.s32.totalorder %s49, %s51
      %p58 = scmp.eq.s32.totalorder %s20, 1
      %p59 = por %p57, %p58
      %p60 = scmp.ne.s32.totalorder %s51, %s52
      %p61 = scmp.eq.s32.totalorder %s20, 0
      %p62 = por %p60, %p61
      %p63 = scmp.ne.s32.totalorder %s51, %s52
      %p64 = scmp.eq.s32.totalorder %s21, 1
      %p65 = por %p63, %p64
      %p67 = scmp.ne.s32.totalorder %s52, %s66
      %p68 = scmp.eq.s32.totalorder %s21, 0
      %p69 = por %p67, %p68
      %s71 = sadd.s32 %s70, 1
      %p74 = scmp.eq.s32.totalorder %s15, 1
      %p75 = scmp.ne.s32.totalorder %s70, %s72
      %p76 = scmp.eq.s32.totalorder %s15, 0
      %p77 = por %p75, %p76
      %p78 = scmp.ne.s32.totalorder %s70, %s72
      %p79 = scmp.eq.s32.totalorder %s20, 1
      %p80 = por %p78, %p79
      %p81 = scmp.ne.s32.totalorder %s72, %s73
      %p82 = scmp.eq.s32.totalorder %s20, 0
      %p83 = por %p81, %p82
      %p84 = scmp.ne.s32.totalorder %s72, %s73
      %p85 = scmp.eq.s32.totalorder %s21, 1
      %p86 = por %p84, %p85
      %p88 = scmp.ne.s32.totalorder %s73, %s87
      %p89 = scmp.eq.s32.totalorder %s21, 0
      %p90 = por %p88, %p89
      %s92 = sadd.s32 %s91, 1
      %p95 = scmp.eq.s32.totalorder %s15, 1
      %p96 = scmp.ne.s32.totalorder %s91, %s93
      %p97 = scmp.eq.s32.totalorder %s15, 0
      %p98 = por %p96, %p97
      %p99 = scmp.ne.s32.totalorder %s91, %s93
      %p100 = scmp.eq.s32.totalorder %s20, 1
      %p101 = por %p99, %p100
      %p102 = scmp.ne.s32.totalorder %s93, %s94
      %p103 = scmp.eq.s32.totalorder %s20, 0
      %p104 = por %p102, %p103
      %p105 = scmp.ne.s32.totalorder %s93, %s94
      %p106 = scmp.eq.s32.totalorder %s21, 1
      %p107 = por %p105, %p106
      %p109 = scmp.ne.s32.totalorder %s94, %s108
      %p110 = scmp.eq.s32.totalorder %s21, 0
      %p111 = por %p109, %p110
      %s113 = sadd.s32 %s112, 1
      %p116 = scmp.eq.s32.totalorder %s15, 1
      %p117 = scmp.ne.s32.totalorder %s112, %s114
      %p118 = scmp.eq.s32.totalorder %s15, 0
      %p119 = por %p117, %p118
      %p120 = scmp.ne.s32.totalorder %s112, %s114
      %p121 = scmp.eq.s32.totalorder %s20, 1
      %p122 = por %p120, %p121
      %p123 = scmp.ne.s32.totalorder %s114, %s115
      %p124 = scmp.eq.s32.totalorder %s20, 0
      %p125 = por %p123, %p124
      %p126 = scmp.ne.s32.totalorder %s114, %s115
      %p127 = scmp.eq.s32.totalorder %s21, 1
      %p128 = por %p126, %p127
      %p130 = scmp.ne.s32.totalorder %s115, %s129
      %p131 = scmp.eq.s32.totalorder %s21, 0
      %p132 = por %p130, %p131
      %s133 = ssub.s32 %s15, %s22
      %p134 = scmp.eq.s32.totalorder %s133, 0
      %s136 = sadd.s32 %s135, 1
      %s137 = scalar_select %p134, %s135, %s136
      %p140 = pneg %p134
      %p141 = scmp.eq.s32.totalorder %s15, 1
      %p142 = por %p140, %p141
      %p143 = scmp.ne.s32.totalorder %s135, %s138
      %p144 = scmp.eq.s32.totalorder %s15, 0
      %p145 = por %p143, %p144
      %p146 = scmp.ne.s32.totalorder %s135, %s138
      %p147 = scmp.eq.s32.totalorder %s20, 1
      %p148 = por %p146, %p147
      %p149 = scmp.ne.s32.totalorder %s138, %s139
      %p150 = scmp.eq.s32.totalorder %s20, 0
      %p151 = por %p149, %p150
      %p152 = scmp.ne.s32.totalorder %s138, %s139
      %p153 = scmp.eq.s32.totalorder %s21, 1
      %p154 = por %p152, %p153
      %p156 = scmp.ne.s32.totalorder %s139, %s155
      %p157 = scmp.eq.s32.totalorder %s21, 0
      %p158 = por %p156, %p157
      %p159 = scmp.le.s32.totalorder 1, %s15
      %p160 = scmp.lt.s32.totalorder %s15, 3
      %p161 = pnand %p159, %p160
      %p162 = pneg %p161
      // Predicated region
      $region9: #{tpu_custom_call.1} parent=5 // pred_check
        _
      $region10: #{tpu_custom_call.1} parent=5 // pred_check_branch
        %164 = sbr.rel (%p161) target = $region12
      $region11: #{tpu_custom_call.1} parent=5 // pred_region
        %s165 = ssub.s32 %s15, 1
        // Predicated region
        $region13: #{tpu_custom_call.1} parent=11 // pred_check
          %p166 = pneg %p62
        $region14: #{tpu_custom_call.1} parent=11 // pred_check_branch
          %168 = sbr.rel (%p166) target = $region16
        $region15: #{tpu_custom_call.1} parent=11 // pred_region
          %s170 = ssub.s32 14336, 14336
          %171 = vsyncadd [#allocation5], %s170
          %s172 = sshll.u32 [#allocation4], 4
          %s173 = int_to_ptr.vmem [resolvable:$true] %s172
          %178 = dma.hbm_to_vmem [thread:$0]  %s1, 14336, %s173, [#allocation5], 128, 128, 8
        $region16: #{tpu_custom_call.1} parent=11 // pred_fallthru
          _
        // Predicated region
        $region17: #{tpu_custom_call.1} parent=11 // pred_check
          %p179 = pneg %p83
        $region18: #{tpu_custom_call.1} parent=11 // pred_check_branch
          %181 = sbr.rel (%p179) target = $region20
        $region19: #{tpu_custom_call.1} parent=11 // pred_region
          %s183 = ssub.s32 2048, 2048
          %184 = vsyncadd [#allocation5], %s183
          %s185 = sshll.u32 [#allocation6], 4
          %s186 = int_to_ptr.vmem [resolvable:$true] %s185
          %191 = dma.hbm_to_vmem [thread:$0]  %s2, 2048, %s186, [#allocation5], 64, 64, 4
        $region20: #{tpu_custom_call.1} parent=11 // pred_fallthru
          _
        // Predicated region
        $region21: #{tpu_custom_call.1} parent=11 // pred_check
          %p192 = pneg %p104
        $region22: #{tpu_custom_call.1} parent=11 // pred_check_branch
          %194 = sbr.rel (%p192) target = $region24
        $region23: #{tpu_custom_call.1} parent=11 // pred_region
          _
        $region24: #{tpu_custom_call.1} parent=11 // pred_fallthru
          _
        // Predicated region
        $region25: #{tpu_custom_call.1} parent=11 // pred_check
          %p195 = pneg %p125
        $region26: #{tpu_custom_call.1} parent=11 // pred_check_branch
          %197 = sbr.rel (%p195) target = $region28
        $region27: #{tpu_custom_call.1} parent=11 // pred_region
          _
        $region28: #{tpu_custom_call.1} parent=11 // pred_fallthru
          _
      $region12: #{tpu_custom_call.1} parent=5 // pred_fallthru
        _
      %p198 = scmp.lt.s32.totalorder %s15, 2
      // Predicated region
      $region29: #{tpu_custom_call.1} parent=5 // pred_check
        %p199 = pneg %p198
      $region30: #{tpu_custom_call.1} parent=5 // pred_check_branch
        %201 = sbr.rel (%p199) target = $region32
      $region31: #{tpu_custom_call.1} parent=5 // pred_region
        // Predicated region
        $region33: #{tpu_custom_call.1} parent=31 // pred_check
          %p202 = pneg %p35
        $region34: #{tpu_custom_call.1} parent=31 // pred_check_branch
          %204 = sbr.rel (%p202) target = $region36
        $region35: #{tpu_custom_call.1} parent=31 // pred_region
          %s205 = sand.u32 %s25, 1
          %s206 = scalar_lea.sflag [#allocation3], %s205
          %s207 = sand.u32 %s25, 1
          %s208 = smul.addr %s207, 448
          %s209 = scalar_lea.vmem [#allocation2], %s208
          %s210 = smul.u32 16, %s15
          %s212 = ssub.s32 7168, 7168
          %213 = vsyncadd %s206, %s212
          %s214 = smul.addr %s210, 7
          %s215 = smul.addr %s214, 64
          %s216 = scalar_lea.hbm %s0, %s215
          %s217 = sshll.u32 %s209, 4
          %s218 = int_to_ptr.vmem [resolvable:$true] %s217
          %223 = dma.hbm_to_vmem [thread:$0]  %s216, 7168, %s218, %s206, 448, 448, 28
        $region36: #{tpu_custom_call.1} parent=31 // pred_fallthru
          _
      $region32: #{tpu_custom_call.1} parent=5 // pred_fallthru
        _
      %p224 = scmp.le.s32.totalorder 1, %s15
      %p225 = scmp.lt.s32.totalorder %s15, 3
      %p226 = pnand %p224, %p225
      %p227 = pneg %p226
      // Predicated region
      $region37: #{tpu_custom_call.1} parent=5 // pred_check
        _
      $region38: #{tpu_custom_call.1} parent=5 // pred_check_branch
        %229 = sbr.rel (%p226) target = $region40
      $region39: #{tpu_custom_call.1} parent=5 // pred_region
        %s230 = ssub.s32 %s15, 1
        %s231 = sand.u32 %s28, 1
        %s232 = scalar_lea.sflag [#allocation3], %s231
        %s233 = sand.u32 %s28, 1
        %s234 = smul.addr %s233, 448
        %s235 = scalar_lea.vmem [#allocation2], %s234
        // Predicated region
        $region41: #{tpu_custom_call.1} parent=39 // pred_check
          %p236 = pneg %p41
        $region42: #{tpu_custom_call.1} parent=39 // pred_check_branch
          %238 = sbr.rel (%p236) target = $region44
        $region43: #{tpu_custom_call.1} parent=39 // pred_region
          %239 = dma.done %s232, 7168
        $region44: #{tpu_custom_call.1} parent=39 // pred_fallthru
          _
        // Predicated region
        $region45: #{tpu_custom_call.1} parent=39 // pred_check
          %p240 = pneg %p62
        $region46: #{tpu_custom_call.1} parent=39 // pred_check_branch
          %242 = sbr.rel (%p240) target = $region48
        $region47: #{tpu_custom_call.1} parent=39 // pred_region
          %243 = dma.done [#allocation5], 14336
        $region48: #{tpu_custom_call.1} parent=39 // pred_fallthru
          _
        // Predicated region
        $region49: #{tpu_custom_call.1} parent=39 // pred_check
          %p244 = pneg %p83
        $region50: #{tpu_custom_call.1} parent=39 // pred_check_branch
          %246 = sbr.rel (%p244) target = $region52
        $region51: #{tpu_custom_call.1} parent=39 // pred_region
          %247 = dma.done [#allocation5], 2048
        $region52: #{tpu_custom_call.1} parent=39 // pred_fallthru
          _
        %s248 = sand.u32 %s28, 1
        %s249 = scalar_lea.sflag [#allocation3], %s248
        %s250 = sand.u32 %s28, 1
        %s251 = smul.addr %s250, 448
        %s252 = scalar_lea.vmem [#allocation2], %s251
        %p253 = pneg %p41
        %p254 = pneg %p38
        %p255 = pneg %p62
        %p256 = pneg %p59
        %p257 = pneg %p83
        %p258 = pneg %p80
        %p259 = pneg %p104
        %p260 = pneg %p101
        %p261 = pneg %p125
        %p262 = pneg %p122
        %p263 = pneg %p151
        %p264 = pneg %p148
        %s265 = smul.u32 16, %s20
        %p266 = scmp.lt.s32.totalorder %s265, 31
        %s267 = scalar_select %p266, %s265, 31
        %s268 = smul.addr %s267, 8
        %s269 = scalar_lea.vmem %s5, %s268
        %s270 = smul.u32 16, %s20
        %s271 = smul.u32 16, %s20
        %p272 = scmp.lt.s32.totalorder %s271, 31
        %s273 = scalar_select %p272, %s271, 31
        %s274 = smul.addr %s273, 8
        %s275 = scalar_lea.vmem %s5, %s274
        %s276 = smul.u32 16, %s20
        %v278 = vld [vmem:[%s235] sm:$0xff]
        %v279 = vld [vmem:[%s235 + $0x8] sm:$0xff]
        %v280 = vld [vmem:[%s235 + $0x10] sm:$0xff]
        %v281 = vld [vmem:[%s235 + $0x18] sm:$0xf]
        %v282 = vld [vmem:[%s235 + $0x1c] sm:$0xff]
        %v283 = vld [vmem:[%s235 + $0x24] sm:$0xff]
        %v284 = vld [vmem:[%s235 + $0x2c] sm:$0xff]
        %v285 = vld [vmem:[%s235 + $0x34] sm:$0xf]
        %v286 = vld [vmem:[%s235 + $0x38] sm:$0xff]
        %v287 = vld [vmem:[%s235 + $0x40] sm:$0xff]
        %v288 = vld [vmem:[%s235 + $0x48] sm:$0xff]
        %v289 = vld [vmem:[%s235 + $0x50] sm:$0xf]
        %v290 = vld [vmem:[%s235 + $0x54] sm:$0xff]
        %v291 = vld [vmem:[%s235 + $0x5c] sm:$0xff]
        %v292 = vld [vmem:[%s235 + $0x64] sm:$0xff]
        %v293 = vld [vmem:[%s235 + $0x6c] sm:$0xf]
        %v294 = vld [vmem:[%s235 + $0x70] sm:$0xff]
        %v295 = vld [vmem:[%s235 + $0x78] sm:$0xff]
        %v296 = vld [vmem:[%s235 + $0x80] sm:$0xff]
        %v297 = vld [vmem:[%s235 + $0x88] sm:$0xf]
        %v298 = vld [vmem:[%s235 + $0x8c] sm:$0xff]
        %v299 = vld [vmem:[%s235 + $0x94] sm:$0xff]
        %v300 = vld [vmem:[%s235 + $0x9c] sm:$0xff]
        %v301 = vld [vmem:[%s235 + $0xa4] sm:$0xf]
        %v302 = vld [vmem:[%s235 + $0xa8] sm:$0xff]
        %v303 = vld [vmem:[%s235 + $0xb0] sm:$0xff]
        %v304 = vld [vmem:[%s235 + $0xb8] sm:$0xff]
        %v305 = vld [vmem:[%s235 + $0xc0] sm:$0xf]
        %v306 = vld [vmem:[%s235 + $0xc4] sm:$0xff]
        %v307 = vld [vmem:[%s235 + $0xcc] sm:$0xff]
        %v308 = vld [vmem:[%s235 + $0xd4] sm:$0xff]
        %v309 = vld [vmem:[%s235 + $0xdc] sm:$0xf]
        %v310 = vld [vmem:[%s235 + $0xe0] sm:$0xff]
        %v311 = vld [vmem:[%s235 + $0xe8] sm:$0xff]
        %v312 = vld [vmem:[%s235 + $0xf0] sm:$0xff]
        %v313 = vld [vmem:[%s235 + $0xf8] sm:$0xf]
        %v314 = vld [vmem:[%s235 + $0xfc] sm:$0xff]
        %v315 = vld [vmem:[%s235 + $0x104] sm:$0xff]
        %v316 = vld [vmem:[%s235 + $0x10c] sm:$0xff]
        %v317 = vld [vmem:[%s235 + $0x114] sm:$0xf]
        %v318 = vld [vmem:[%s235 + $0x118] sm:$0xff]
        %v319 = vld [vmem:[%s235 + $0x120] sm:$0xff]
        %v320 = vld [vmem:[%s235 + $0x128] sm:$0xff]
        %v321 = vld [vmem:[%s235 + $0x130] sm:$0xf]
        %v322 = vld [vmem:[%s235 + $0x134] sm:$0xff]
        %v323 = vld [vmem:[%s235 + $0x13c] sm:$0xff]
        %v324 = vld [vmem:[%s235 + $0x144] sm:$0xff]
        %v325 = vld [vmem:[%s235 + $0x14c] sm:$0xf]
        %v326 = vld [vmem:[%s235 + $0x150] sm:$0xff]
        %v327 = vld [vmem:[%s235 + $0x158] sm:$0xff]
        %v328 = vld [vmem:[%s235 + $0x160] sm:$0xff]
        %v329 = vld [vmem:[%s235 + $0x168] sm:$0xf]
        %v330 = vld [vmem:[%s235 + $0x16c] sm:$0xff]
        %v331 = vld [vmem:[%s235 + $0x174] sm:$0xff]
        %v332 = vld [vmem:[%s235 + $0x17c] sm:$0xff]
        %v333 = vld [vmem:[%s235 + $0x184] sm:$0xf]
        %v334 = vld [vmem:[%s235 + $0x188] sm:$0xff]
        %v335 = vld [vmem:[%s235 + $0x190] sm:$0xff]
        %v336 = vld [vmem:[%s235 + $0x198] sm:$0xff]
        %v337 = vld [vmem:[%s235 + $0x1a0] sm:$0xf]
        %v338 = vld [vmem:[%s235 + $0x1a4] sm:$0xff]
        %v339 = vld [vmem:[%s235 + $0x1ac] sm:$0xff]
        %v340 = vld [vmem:[%s235 + $0x1b4] sm:$0xff]
        %v341 = vld [vmem:[%s235 + $0x1bc] sm:$0xf]
        %v342 = vld [vmem:[%s4] ss:$4 sm:$0x3]
        %v343 = vld [vmem:[#allocation4] sm:$0xff]
        %v344 = vld [vmem:[#allocation4 + $0x8] sm:$0xff]
        %v345 = vld [vmem:[#allocation4 + $0x10] sm:$0xff]
        %v346 = vld [vmem:[#allocation4 + $0x18] sm:$0xff]
        %v347 = vld [vmem:[#allocation4 + $0x20] sm:$0xff]
        %v348 = vld [vmem:[#allocation4 + $0x28] sm:$0xff]
        %v349 = vld [vmem:[#allocation4 + $0x30] sm:$0xff]
        %v350 = vld [vmem:[#allocation4 + $0x38] sm:$0xff]
        %v351 = vld [vmem:[#allocation4 + $0x40] sm:$0xff]
        %v352 = vld [vmem:[#allocation4 + $0x48] sm:$0xff]
        %v353 = vld [vmem:[#allocation4 + $0x50] sm:$0xff]
        %v354 = vld [vmem:[#allocation4 + $0x58] sm:$0xff]
        %v355 = vld [vmem:[#allocation4 + $0x60] sm:$0xff]
        %v356 = vld [vmem:[#allocation4 + $0x68] sm:$0xff]
        %v357 = vld [vmem:[#allocation4 + $0x70] sm:$0xff]
        %v358 = vld [vmem:[#allocation4 + $0x78] sm:$0xff]
        %v359 = vld [vmem:[#allocation4 + $0x80] sm:$0xff]
        %v360 = vld [vmem:[#allocation4 + $0x88] sm:$0xff]
        %v361 = vld [vmem:[#allocation4 + $0x90] sm:$0xff]
        %v362 = vld [vmem:[#allocation4 + $0x98] sm:$0xff]
        %v363 = vld [vmem:[#allocation4 + $0xa0] sm:$0xff]
        %v364 = vld [vmem:[#allocation4 + $0xa8] sm:$0xff]
        %v365 = vld [vmem:[#allocation4 + $0xb0] sm:$0xff]
        %v366 = vld [vmem:[#allocation4 + $0xb8] sm:$0xff]
        %v367 = vld [vmem:[#allocation4 + $0xc0] sm:$0xff]
        %v368 = vld [vmem:[#allocation4 + $0xc8] sm:$0xff]
        %v369 = vld [vmem:[#allocation4 + $0xd0] sm:$0xff]
        %v370 = vld [vmem:[#allocation4 + $0xd8] sm:$0xff]
        %v371 = vld [vmem:[#allocation4 + $0xe0] sm:$0xff]
        %v372 = vld [vmem:[#allocation4 + $0xe8] sm:$0xff]
        %v373 = vld [vmem:[#allocation4 + $0xf0] sm:$0xff]
        %v374 = vld [vmem:[#allocation4 + $0xf8] sm:$0xff]
        %v375 = vld [vmem:[#allocation4 + $0x100] sm:$0xff]
        %v376 = vld [vmem:[#allocation4 + $0x108] sm:$0xff]
        %v377 = vld [vmem:[#allocation4 + $0x110] sm:$0xff]
        %v378 = vld [vmem:[#allocation4 + $0x118] sm:$0xff]
        %v379 = vld [vmem:[#allocation4 + $0x120] sm:$0xff]
        %v380 = vld [vmem:[#allocation4 + $0x128] sm:$0xff]
        %v381 = vld [vmem:[#allocation4 + $0x130] sm:$0xff]
        %v382 = vld [vmem:[#allocation4 + $0x138] sm:$0xff]
        %v383 = vld [vmem:[#allocation4 + $0x140] sm:$0xff]
        %v384 = vld [vmem:[#allocation4 + $0x148] sm:$0xff]
        %v385 = vld [vmem:[#allocation4 + $0x150] sm:$0xff]
        %v386 = vld [vmem:[#allocation4 + $0x158] sm:$0xff]
        %v387 = vld [vmem:[#allocation4 + $0x160] sm:$0xff]
        %v388 = vld [vmem:[#allocation4 + $0x168] sm:$0xff]
        %v389 = vld [vmem:[#allocation4 + $0x170] sm:$0xff]
        %v390 = vld [vmem:[#allocation4 + $0x178] sm:$0xff]
        %v391 = vld [vmem:[#allocation4 + $0x180] sm:$0xff]
        %v392 = vld [vmem:[#allocation4 + $0x188] sm:$0xff]
        %v393 = vld [vmem:[#allocation4 + $0x190] sm:$0xff]
        %v394 = vld [vmem:[#allocation4 + $0x198] sm:$0xff]
        %v395 = vld [vmem:[#allocation4 + $0x1a0] sm:$0xff]
        %v396 = vld [vmem:[#allocation4 + $0x1a8] sm:$0xff]
        %v397 = vld [vmem:[#allocation4 + $0x1b0] sm:$0xff]
        %v398 = vld [vmem:[#allocation4 + $0x1b8] sm:$0xff]
        %v399 = vld [vmem:[#allocation4 + $0x1c0] sm:$0xff]
        %v400 = vld [vmem:[#allocation4 + $0x1c8] sm:$0xff]
        %v401 = vld [vmem:[#allocation4 + $0x1d0] sm:$0xff]
        %v402 = vld [vmem:[#allocation4 + $0x1d8] sm:$0xff]
        %v403 = vld [vmem:[#allocation4 + $0x1e0] sm:$0xff]
        %v404 = vld [vmem:[#allocation4 + $0x1e8] sm:$0xff]
        %v405 = vld [vmem:[#allocation4 + $0x1f0] sm:$0xff]
        %v406 = vld [vmem:[#allocation4 + $0x1f8] sm:$0xff]
        %v407 = vld [vmem:[#allocation4 + $0x200] sm:$0xff]
        %v408 = vld [vmem:[#allocation4 + $0x208] sm:$0xff]
        %v409 = vld [vmem:[#allocation4 + $0x210] sm:$0xff]
        %v410 = vld [vmem:[#allocation4 + $0x218] sm:$0xff]
        %v411 = vld [vmem:[#allocation4 + $0x220] sm:$0xff]
        %v412 = vld [vmem:[#allocation4 + $0x228] sm:$0xff]
        %v413 = vld [vmem:[#allocation4 + $0x230] sm:$0xff]
        %v414 = vld [vmem:[#allocation4 + $0x238] sm:$0xff]
        %v415 = vld [vmem:[#allocation4 + $0x240] sm:$0xff]
        %v416 = vld [vmem:[#allocation4 + $0x248] sm:$0xff]
        %v417 = vld [vmem:[#allocation4 + $0x250] sm:$0xff]
        %v418 = vld [vmem:[#allocation4 + $0x258] sm:$0xff]
        %v419 = vld [vmem:[#allocation4 + $0x260] sm:$0xff]
        %v420 = vld [vmem:[#allocation4 + $0x268] sm:$0xff]
        %v421 = vld [vmem:[#allocation4 + $0x270] sm:$0xff]
        %v422 = vld [vmem:[#allocation4 + $0x278] sm:$0xff]
        %v423 = vld [vmem:[#allocation4 + $0x280] sm:$0xff]
        %v424 = vld [vmem:[#allocation4 + $0x288] sm:$0xff]
        %v425 = vld [vmem:[#allocation4 + $0x290] sm:$0xff]
        %v426 = vld [vmem:[#allocation4 + $0x298] sm:$0xff]
        %v427 = vld [vmem:[#allocation4 + $0x2a0] sm:$0xff]
        %v428 = vld [vmem:[#allocation4 + $0x2a8] sm:$0xff]
        %v429 = vld [vmem:[#allocation4 + $0x2b0] sm:$0xff]
        %v430 = vld [vmem:[#allocation4 + $0x2b8] sm:$0xff]
        %v431 = vld [vmem:[#allocation4 + $0x2c0] sm:$0xff]
        %v432 = vld [vmem:[#allocation4 + $0x2c8] sm:$0xff]
        %v433 = vld [vmem:[#allocation4 + $0x2d0] sm:$0xff]
        %v434 = vld [vmem:[#allocation4 + $0x2d8] sm:$0xff]
        %v435 = vld [vmem:[#allocation4 + $0x2e0] sm:$0xff]
        %v436 = vld [vmem:[#allocation4 + $0x2e8] sm:$0xff]
        %v437 = vld [vmem:[#allocation4 + $0x2f0] sm:$0xff]
        %v438 = vld [vmem:[#allocation4 + $0x2f8] sm:$0xff]
        %v439 = vld [vmem:[#allocation4 + $0x300] sm:$0xff]
        %v440 = vld [vmem:[#allocation4 + $0x308] sm:$0xff]
        %v441 = vld [vmem:[#allocation4 + $0x310] sm:$0xff]
        %v442 = vld [vmem:[#allocation4 + $0x318] sm:$0xff]
        %v443 = vld [vmem:[#allocation4 + $0x320] sm:$0xff]
        %v444 = vld [vmem:[#allocation4 + $0x328] sm:$0xff]
        %v445 = vld [vmem:[#allocation4 + $0x330] sm:$0xff]
        %v446 = vld [vmem:[#allocation4 + $0x338] sm:$0xff]
        %v447 = vld [vmem:[#allocation4 + $0x340] sm:$0xff]
        %v448 = vld [vmem:[#allocation4 + $0x348] sm:$0xff]
        %v449 = vld [vmem:[#allocation4 + $0x350] sm:$0xff]
        %v450 = vld [vmem:[#allocation4 + $0x358] sm:$0xff]
        %v451 = vld [vmem:[#allocation4 + $0x360] sm:$0xff]
        %v452 = vld [vmem:[#allocation4 + $0x368] sm:$0xff]
        %v453 = vld [vmem:[#allocation4 + $0x370] sm:$0xff]
        %v454 = vld [vmem:[#allocation4 + $0x378] sm:$0xff]
        %v456 = vlaneseq
        %v457 = vshrl.u32 %v456, 7
        %v458 = vsub.s32 0, %v457
        %v459 = vrot.slane %v342, %v458
        %v460 = vlaneseq
        %v461 = vshrl.u32 %v460, 7
        %v462 = vsub.s32 1, %v461
        %v463 = vrot.slane %v342, %v462
        %v530 = vunpack.c.l.b16 %v278
        %v531 = vunpack.c.h.b16 %v278
        %v532 = vunpack.c.l.b16 %v279
        %v533 = vunpack.c.h.b16 %v279
        %v534 = vunpack.c.l.b16 %v280
        %v535 = vunpack.c.h.b16 %v280
        %v536 = vunpack.c.l.b16 %v281
        %v537 = vunpack.c.l.b16 %v282
        %v538 = vunpack.c.h.b16 %v282
        %v539 = vunpack.c.l.b16 %v283
        %v540 = vunpack.c.h.b16 %v283
        %v541 = vunpack.c.l.b16 %v284
        %v542 = vunpack.c.h.b16 %v284
        %v543 = vunpack.c.l.b16 %v285
        %v544 = vunpack.c.l.b16 %v286
        %v545 = vunpack.c.h.b16 %v286
        %v546 = vunpack.c.l.b16 %v287
        %v547 = vunpack.c.h.b16 %v287
        %v548 = vunpack.c.l.b16 %v288
        %v549 = vunpack.c.h.b16 %v288
        %v550 = vunpack.c.l.b16 %v289
        %v551 = vunpack.c.l.b16 %v290
        %v552 = vunpack.c.h.b16 %v290
        %v553 = vunpack.c.l.b16 %v291
        %v554 = vunpack.c.h.b16 %v291
        %v555 = vunpack.c.l.b16 %v292
        %v556 = vunpack.c.h.b16 %v292
        %v557 = vunpack.c.l.b16 %v293
        %v558 = vunpack.c.l.b16 %v294
        %v559 = vunpack.c.h.b16 %v294
        %v560 = vunpack.c.l.b16 %v295
        %v561 = vunpack.c.h.b16 %v295
        %v562 = vunpack.c.l.b16 %v296
        %v563 = vunpack.c.h.b16 %v296
        %v564 = vunpack.c.l.b16 %v297
        %v565 = vunpack.c.l.b16 %v298
        %v566 = vunpack.c.h.b16 %v298
        %v567 = vunpack.c.l.b16 %v299
        %v568 = vunpack.c.h.b16 %v299
        %v569 = vunpack.c.l.b16 %v300
        %v570 = vunpack.c.h.b16 %v300
        %v571 = vunpack.c.l.b16 %v301
        %v572 = vunpack.c.l.b16 %v302
        %v573 = vunpack.c.h.b16 %v302
        %v574 = vunpack.c.l.b16 %v303
        %v575 = vunpack.c.h.b16 %v303
        %v576 = vunpack.c.l.b16 %v304
        %v577 = vunpack.c.h.b16 %v304
        %v578 = vunpack.c.l.b16 %v305
        %v579 = vunpack.c.l.b16 %v306
        %v580 = vunpack.c.h.b16 %v306
        %v581 = vunpack.c.l.b16 %v307
        %v582 = vunpack.c.h.b16 %v307
        %v583 = vunpack.c.l.b16 %v308
        %v584 = vunpack.c.h.b16 %v308
        %v585 = vunpack.c.l.b16 %v309
        %v586 = vunpack.c.l.b16 %v310
        %v587 = vunpack.c.h.b16 %v310
        %v588 = vunpack.c.l.b16 %v311
        %v589 = vunpack.c.h.b16 %v311
        %v590 = vunpack.c.l.b16 %v312
        %v591 = vunpack.c.h.b16 %v312
        %v592 = vunpack.c.l.b16 %v313
        %v593 = vunpack.c.l.b16 %v314
        %v594 = vunpack.c.h.b16 %v314
        %v595 = vunpack.c.l.b16 %v315
        %v596 = vunpack.c.h.b16 %v315
        %v597 = vunpack.c.l.b16 %v316
        %v598 = vunpack.c.h.b16 %v316
        %v599 = vunpack.c.l.b16 %v317
        %v600 = vunpack.c.l.b16 %v318
        %v601 = vunpack.c.h.b16 %v318
        %v602 = vunpack.c.l.b16 %v319
        %v603 = vunpack.c.h.b16 %v319
        %v604 = vunpack.c.l.b16 %v320
        %v605 = vunpack.c.h.b16 %v320
        %v606 = vunpack.c.l.b16 %v321
        %v607 = vunpack.c.l.b16 %v322
        %v608 = vunpack.c.h.b16 %v322
        %v609 = vunpack.c.l.b16 %v323
        %v610 = vunpack.c.h.b16 %v323
        %v611 = vunpack.c.l.b16 %v324
        %v612 = vunpack.c.h.b16 %v324
        %v613 = vunpack.c.l.b16 %v325
        %v614 = vunpack.c.l.b16 %v326
        %v615 = vunpack.c.h.b16 %v326
        %v616 = vunpack.c.l.b16 %v327
        %v617 = vunpack.c.h.b16 %v327
        %v618 = vunpack.c.l.b16 %v328
        %v619 = vunpack.c.h.b16 %v328
        %v620 = vunpack.c.l.b16 %v329
        %v621 = vunpack.c.l.b16 %v330
        %v622 = vunpack.c.h.b16 %v330
        %v623 = vunpack.c.l.b16 %v331
        %v624 = vunpack.c.h.b16 %v331
        %v625 = vunpack.c.l.b16 %v332
        %v626 = vunpack.c.h.b16 %v332
        %v627 = vunpack.c.l.b16 %v333
        %v628 = vunpack.c.l.b16 %v334
        %v629 = vunpack.c.h.b16 %v334
        %v630 = vunpack.c.l.b16 %v335
        %v631 = vunpack.c.h.b16 %v335
        %v632 = vunpack.c.l.b16 %v336
        %v633 = vunpack.c.h.b16 %v336
        %v634 = vunpack.c.l.b16 %v337
        %v635 = vunpack.c.l.b16 %v338
        %v636 = vunpack.c.h.b16 %v338
        %v637 = vunpack.c.l.b16 %v339
        %v638 = vunpack.c.h.b16 %v339
        %v639 = vunpack.c.l.b16 %v340
        %v640 = vunpack.c.h.b16 %v340
        %v641 = vunpack.c.l.b16 %v341
        %v642 = vpack.c.b16 %v537, %v530
        %v643 = vpack.c.b16 %v538, %v531
        %v644 = vpack.c.b16 %v539, %v532
        %v645 = vpack.c.b16 %v540, %v533
        %v646 = vpack.c.b16 %v541, %v534
        %v647 = vpack.c.b16 %v542, %v535
        %v648 = vpack.c.b16 %v543, %v536
        %v649 = vpack.c.b16 %v551, %v544
        %v650 = vpack.c.b16 %v552, %v545
        %v651 = vpack.c.b16 %v553, %v546
        %v652 = vpack.c.b16 %v554, %v547
        %v653 = vpack.c.b16 %v555, %v548
        %v654 = vpack.c.b16 %v556, %v549
        %v655 = vpack.c.b16 %v557, %v550
        %v656 = vpack.c.b16 %v565, %v558
        %v657 = vpack.c.b16 %v566, %v559
        %v658 = vpack.c.b16 %v567, %v560
        %v659 = vpack.c.b16 %v568, %v561
        %v660 = vpack.c.b16 %v569, %v562
        %v661 = vpack.c.b16 %v570, %v563
        %v662 = vpack.c.b16 %v571, %v564
        %v663 = vpack.c.b16 %v579, %v572
        %v664 = vpack.c.b16 %v580, %v573
        %v665 = vpack.c.b16 %v581, %v574
        %v666 = vpack.c.b16 %v582, %v575
        %v667 = vpack.c.b16 %v583, %v576
        %v668 = vpack.c.b16 %v584, %v577
        %v669 = vpack.c.b16 %v585, %v578
        %v670 = vpack.c.b16 %v593, %v586
        %v671 = vpack.c.b16 %v594, %v587
        %v672 = vpack.c.b16 %v595, %v588
        %v673 = vpack.c.b16 %v596, %v589
        %v674 = vpack.c.b16 %v597, %v590
        %v675 = vpack.c.b16 %v598, %v591
        %v676 = vpack.c.b16 %v599, %v592
        %v677 = vpack.c.b16 %v607, %v600
        %v678 = vpack.c.b16 %v608, %v601
        %v679 = vpack.c.b16 %v609, %v602
        %v680 = vpack.c.b16 %v610, %v603
        %v681 = vpack.c.b16 %v611, %v604
        %v682 = vpack.c.b16 %v612, %v605
        %v683 = vpack.c.b16 %v613, %v606
        %v684 = vpack.c.b16 %v621, %v614
        %v685 = vpack.c.b16 %v622, %v615
        %v686 = vpack.c.b16 %v623, %v616
        %v687 = vpack.c.b16 %v624, %v617
        %v688 = vpack.c.b16 %v625, %v618
        %v689 = vpack.c.b16 %v626, %v619
        %v690 = vpack.c.b16 %v627, %v620
        %v691 = vpack.c.b16 %v635, %v628
        %v692 = vpack.c.b16 %v636, %v629
        %v693 = vpack.c.b16 %v637, %v630
        %v694 = vpack.c.b16 %v638, %v631
        %v695 = vpack.c.b16 %v639, %v632
        %v696 = vpack.c.b16 %v640, %v633
        %v697 = vpack.c.b16 %v641, %v634
        %v866 = vunpack.c.l.b16 %v343
        %v867 = vunpack.c.h.b16 %v343
        %v868 = vunpack.c.l.b16 %v344
        %v869 = vunpack.c.h.b16 %v344
        %v870 = vunpack.c.l.b16 %v345
        %v871 = vunpack.c.h.b16 %v345
        %v872 = vunpack.c.l.b16 %v346
        %v873 = vunpack.c.h.b16 %v346
        %v874 = vunpack.c.l.b16 %v347
        %v875 = vunpack.c.h.b16 %v347
        %v876 = vunpack.c.l.b16 %v348
        %v877 = vunpack.c.h.b16 %v348
        %v878 = vunpack.c.l.b16 %v349
        %v879 = vunpack.c.h.b16 %v349
        %v880 = vunpack.c.l.b16 %v350
        %v881 = vunpack.c.h.b16 %v350
        %v882 = vunpack.c.l.b16 %v351
        %v883 = vunpack.c.h.b16 %v351
        %v884 = vunpack.c.l.b16 %v352
        %v885 = vunpack.c.h.b16 %v352
        %v886 = vunpack.c.l.b16 %v353
        %v887 = vunpack.c.h.b16 %v353
        %v888 = vunpack.c.l.b16 %v354
        %v889 = vunpack.c.h.b16 %v354
        %v890 = vunpack.c.l.b16 %v355
        %v891 = vunpack.c.h.b16 %v355
        %v892 = vunpack.c.l.b16 %v356
        %v893 = vunpack.c.h.b16 %v356
        %v894 = vunpack.c.l.b16 %v357
        %v895 = vunpack.c.h.b16 %v357
        %v896 = vunpack.c.l.b16 %v358
        %v897 = vunpack.c.h.b16 %v358
        %v898 = vunpack.c.l.b16 %v359
        %v899 = vunpack.c.h.b16 %v359
        %v900 = vunpack.c.l.b16 %v360
        %v901 = vunpack.c.h.b16 %v360
        %v902 = vunpack.c.l.b16 %v361
        %v903 = vunpack.c.h.b16 %v361
        %v904 = vunpack.c.l.b16 %v362
        %v905 = vunpack.c.h.b16 %v362
        %v906 = vunpack.c.l.b16 %v363
        %v907 = vunpack.c.h.b16 %v363
        %v908 = vunpack.c.l.b16 %v364
        %v909 = vunpack.c.h.b16 %v364
        %v910 = vunpack.c.l.b16 %v365
        %v911 = vunpack.c.h.b16 %v365
        %v912 = vunpack.c.l.b16 %v366
        %v913 = vunpack.c.h.b16 %v366
        %v914 = vunpack.c.l.b16 %v367
        %v915 = vunpack.c.h.b16 %v367
        %v916 = vunpack.c.l.b16 %v368
        %v917 = vunpack.c.h.b16 %v368
        %v918 = vunpack.c.l.b16 %v369
        %v919 = vunpack.c.h.b16 %v369
        %v920 = vunpack.c.l.b16 %v370
        %v921 = vunpack.c.h.b16 %v370
        %v922 = vunpack.c.l.b16 %v371
        %v923 = vunpack.c.h.b16 %v371
        %v924 = vunpack.c.l.b16 %v372
        %v925 = vunpack.c.h.b16 %v372
        %v926 = vunpack.c.l.b16 %v373
        %v927 = vunpack.c.h.b16 %v373
        %v928 = vunpack.c.l.b16 %v374
        %v929 = vunpack.c.h.b16 %v374
        %v930 = vunpack.c.l.b16 %v375
        %v931 = vunpack.c.h.b16 %v375
        %v932 = vunpack.c.l.b16 %v376
        %v933 = vunpack.c.h.b16 %v376
        %v934 = vunpack.c.l.b16 %v377
        %v935 = vunpack.c.h.b16 %v377
        %v936 = vunpack.c.l.b16 %v378
        %v937 = vunpack.c.h.b16 %v378
        %v938 = vunpack.c.l.b16 %v379
        %v939 = vunpack.c.h.b16 %v379
        %v940 = vunpack.c.l.b16 %v380
        %v941 = vunpack.c.h.b16 %v380
        %v942 = vunpack.c.l.b16 %v381
        %v943 = vunpack.c.h.b16 %v381
        %v944 = vunpack.c.l.b16 %v382
        %v945 = vunpack.c.h.b16 %v382
        %v946 = vunpack.c.l.b16 %v383
        %v947 = vunpack.c.h.b16 %v383
        %v948 = vunpack.c.l.b16 %v384
        %v949 = vunpack.c.h.b16 %v384
        %v950 = vunpack.c.l.b16 %v385
        %v951 = vunpack.c.h.b16 %v385
        %v952 = vunpack.c.l.b16 %v386
        %v953 = vunpack.c.h.b16 %v386
        %v954 = vunpack.c.l.b16 %v387
        %v955 = vunpack.c.h.b16 %v387
        %v956 = vunpack.c.l.b16 %v388
        %v957 = vunpack.c.h.b16 %v388
        %v958 = vunpack.c.l.b16 %v389
        %v959 = vunpack.c.h.b16 %v389
        %v960 = vunpack.c.l.b16 %v390
        %v961 = vunpack.c.h.b16 %v390
        %v962 = vunpack.c.l.b16 %v391
        %v963 = vunpack.c.h.b16 %v391
        %v964 = vunpack.c.l.b16 %v392
        %v965 = vunpack.c.h.b16 %v392
        %v966 = vunpack.c.l.b16 %v393
        %v967 = vunpack.c.h.b16 %v393
        %v968 = vunpack.c.l.b16 %v394
        %v969 = vunpack.c.h.b16 %v394
        %v970 = vunpack.c.l.b16 %v395
        %v971 = vunpack.c.h.b16 %v395
        %v972 = vunpack.c.l.b16 %v396
        %v973 = vunpack.c.h.b16 %v396
        %v974 = vunpack.c.l.b16 %v397
        %v975 = vunpack.c.h.b16 %v397
        %v976 = vunpack.c.l.b16 %v398
        %v977 = vunpack.c.h.b16 %v398
        %v978 = vunpack.c.l.b16 %v399
        %v979 = vunpack.c.h.b16 %v399
        %v980 = vunpack.c.l.b16 %v400
        %v981 = vunpack.c.h.b16 %v400
        %v982 = vunpack.c.l.b16 %v401
        %v983 = vunpack.c.h.b16 %v401
        %v984 = vunpack.c.l.b16 %v402
        %v985 = vunpack.c.h.b16 %v402
        %v986 = vunpack.c.l.b16 %v403
        %v987 = vunpack.c.h.b16 %v403
        %v988 = vunpack.c.l.b16 %v404
        %v989 = vunpack.c.h.b16 %v404
        %v990 = vunpack.c.l.b16 %v405
        %v991 = vunpack.c.h.b16 %v405
        %v992 = vunpack.c.l.b16 %v406
        %v993 = vunpack.c.h.b16 %v406
        %v994 = vunpack.c.l.b16 %v407
        %v995 = vunpack.c.h.b16 %v407
        %v996 = vunpack.c.l.b16 %v408
        %v997 = vunpack.c.h.b16 %v408
        %v998 = vunpack.c.l.b16 %v409
        %v999 = vunpack.c.h.b16 %v409
        %v1000 = vunpack.c.l.b16 %v410
        %v1001 = vunpack.c.h.b16 %v410
        %v1002 = vunpack.c.l.b16 %v411
        %v1003 = vunpack.c.h.b16 %v411
        %v1004 = vunpack.c.l.b16 %v412
        %v1005 = vunpack.c.h.b16 %v412
        %v1006 = vunpack.c.l.b16 %v413
        %v1007 = vunpack.c.h.b16 %v413
        %v1008 = vunpack.c.l.b16 %v414
        %v1009 = vunpack.c.h.b16 %v414
        %v1010 = vunpack.c.l.b16 %v415
        %v1011 = vunpack.c.h.b16 %v415
        %v1012 = vunpack.c.l.b16 %v416
        %v1013 = vunpack.c.h.b16 %v416
        %v1014 = vunpack.c.l.b16 %v417
        %v1015 = vunpack.c.h.b16 %v417
        %v1016 = vunpack.c.l.b16 %v418
        %v1017 = vunpack.c.h.b16 %v418
        %v1018 = vunpack.c.l.b16 %v419
        %v1019 = vunpack.c.h.b16 %v419
        %v1020 = vunpack.c.l.b16 %v420
        %v1021 = vunpack.c.h.b16 %v420
        %v1022 = vunpack.c.l.b16 %v421
        %v1023 = vunpack.c.h.b16 %v421
        %v1024 = vunpack.c.l.b16 %v422
        %v1025 = vunpack.c.h.b16 %v422
        %v1026 = vunpack.c.l.b16 %v423
        %v1027 = vunpack.c.h.b16 %v423
        %v1028 = vunpack.c.l.b16 %v424
        %v1029 = vunpack.c.h.b16 %v424
        %v1030 = vunpack.c.l.b16 %v425
        %v1031 = vunpack.c.h.b16 %v425
        %v1032 = vunpack.c.l.b16 %v426
        %v1033 = vunpack.c.h.b16 %v426
        %v1034 = vunpack.c.l.b16 %v427
        %v1035 = vunpack.c.h.b16 %v427
        %v1036 = vunpack.c.l.b16 %v428
        %v1037 = vunpack.c.h.b16 %v428
        %v1038 = vunpack.c.l.b16 %v429
        %v1039 = vunpack.c.h.b16 %v429
        %v1040 = vunpack.c.l.b16 %v430
        %v1041 = vunpack.c.h.b16 %v430
        %v1042 = vunpack.c.l.b16 %v431
        %v1043 = vunpack.c.h.b16 %v431
        %v1044 = vunpack.c.l.b16 %v432
        %v1045 = vunpack.c.h.b16 %v432
        %v1046 = vunpack.c.l.b16 %v433
        %v1047 = vunpack.c.h.b16 %v433
        %v1048 = vunpack.c.l.b16 %v434
        %v1049 = vunpack.c.h.b16 %v434
        %v1050 = vunpack.c.l.b16 %v435
        %v1051 = vunpack.c.h.b16 %v435
        %v1052 = vunpack.c.l.b16 %v436
        %v1053 = vunpack.c.h.b16 %v436
        %v1054 = vunpack.c.l.b16 %v437
        %v1055 = vunpack.c.h.b16 %v437
        %v1056 = vunpack.c.l.b16 %v438
        %v1057 = vunpack.c.h.b16 %v438
        %v1058 = vunpack.c.l.b16 %v439
        %v1059 = vunpack.c.h.b16 %v439
        %v1060 = vunpack.c.l.b16 %v440
        %v1061 = vunpack.c.h.b16 %v440
        %v1062 = vunpack.c.l.b16 %v441
        %v1063 = vunpack.c.h.b16 %v441
        %v1064 = vunpack.c.l.b16 %v442
        %v1065 = vunpack.c.h.b16 %v442
        %v1066 = vunpack.c.l.b16 %v443
        %v1067 = vunpack.c.h.b16 %v443
        %v1068 = vunpack.c.l.b16 %v444
        %v1069 = vunpack.c.h.b16 %v444
        %v1070 = vunpack.c.l.b16 %v445
        %v1071 = vunpack.c.h.b16 %v445
        %v1072 = vunpack.c.l.b16 %v446
        %v1073 = vunpack.c.h.b16 %v446
        %v1074 = vunpack.c.l.b16 %v447
        %v1075 = vunpack.c.h.b16 %v447
        %v1076 = vunpack.c.l.b16 %v448
        %v1077 = vunpack.c.h.b16 %v448
        %v1078 = vunpack.c.l.b16 %v449
        %v1079 = vunpack.c.h.b16 %v449
        %v1080 = vunpack.c.l.b16 %v450
        %v1081 = vunpack.c.h.b16 %v450
        %v1082 = vunpack.c.l.b16 %v451
        %v1083 = vunpack.c.h.b16 %v451
        %v1084 = vunpack.c.l.b16 %v452
        %v1085 = vunpack.c.h.b16 %v452
        %v1086 = vunpack.c.l.b16 %v453
        %v1087 = vunpack.c.h.b16 %v453
        %v1088 = vunpack.c.l.b16 %v454
        %v1089 = vunpack.c.h.b16 %v454
        %v1090 = vpack.c.b16 %v868, %v866
        %v1091 = vpack.c.b16 %v869, %v867
        %v1092 = vpack.c.b16 %v872, %v870
        %v1093 = vpack.c.b16 %v873, %v871
        %v1094 = vpack.c.b16 %v876, %v874
        %v1095 = vpack.c.b16 %v877, %v875
        %v1096 = vpack.c.b16 %v880, %v878
        %v1097 = vpack.c.b16 %v881, %v879
        %v1098 = vpack.c.b16 %v884, %v882
        %v1099 = vpack.c.b16 %v885, %v883
        %v1100 = vpack.c.b16 %v888, %v886
        %v1101 = vpack.c.b16 %v889, %v887
        %v1102 = vpack.c.b16 %v892, %v890
        %v1103 = vpack.c.b16 %v893, %v891
        %v1104 = vpack.c.b16 %v896, %v894
        %v1105 = vpack.c.b16 %v897, %v895
        %v1106 = vpack.c.b16 %v900, %v898
        %v1107 = vpack.c.b16 %v901, %v899
        %v1108 = vpack.c.b16 %v904, %v902
        %v1109 = vpack.c.b16 %v905, %v903
        %v1110 = vpack.c.b16 %v908, %v906
        %v1111 = vpack.c.b16 %v909, %v907
        %v1112 = vpack.c.b16 %v912, %v910
        %v1113 = vpack.c.b16 %v913, %v911
        %v1114 = vpack.c.b16 %v916, %v914
        %v1115 = vpack.c.b16 %v917, %v915
        %v1116 = vpack.c.b16 %v920, %v918
        %v1117 = vpack.c.b16 %v921, %v919
        %v1118 = vpack.c.b16 %v924, %v922
        %v1119 = vpack.c.b16 %v925, %v923
        %v1120 = vpack.c.b16 %v928, %v926
        %v1121 = vpack.c.b16 %v929, %v927
        %v1122 = vpack.c.b16 %v932, %v930
        %v1123 = vpack.c.b16 %v933, %v931
        %v1124 = vpack.c.b16 %v936, %v934
        %v1125 = vpack.c.b16 %v937, %v935
        %v1126 = vpack.c.b16 %v940, %v938
        %v1127 = vpack.c.b16 %v941, %v939
        %v1128 = vpack.c.b16 %v944, %v942
        %v1129 = vpack.c.b16 %v945, %v943
        %v1130 = vpack.c.b16 %v948, %v946
        %v1131 = vpack.c.b16 %v949, %v947
        %v1132 = vpack.c.b16 %v952, %v950
        %v1133 = vpack.c.b16 %v953, %v951
        %v1134 = vpack.c.b16 %v956, %v954
        %v1135 = vpack.c.b16 %v957, %v955
        %v1136 = vpack.c.b16 %v960, %v958
        %v1137 = vpack.c.b16 %v961, %v959
        %v1138 = vpack.c.b16 %v964, %v962
        %v1139 = vpack.c.b16 %v965, %v963
        %v1140 = vpack.c.b16 %v968, %v966
        %v1141 = vpack.c.b16 %v969, %v967
        %v1142 = vpack.c.b16 %v972, %v970
        %v1143 = vpack.c.b16 %v973, %v971
        %v1144 = vpack.c.b16 %v976, %v974
        %v1145 = vpack.c.b16 %v977, %v975
        %v1146 = vpack.c.b16 %v980, %v978
        %v1147 = vpack.c.b16 %v981, %v979
        %v1148 = vpack.c.b16 %v984, %v982
        %v1149 = vpack.c.b16 %v985, %v983
        %v1150 = vpack.c.b16 %v988, %v986
        %v1151 = vpack.c.b16 %v989, %v987
        %v1152 = vpack.c.b16 %v992, %v990
        %v1153 = vpack.c.b16 %v993, %v991
        %v1154 = vpack.c.b16 %v996, %v994
        %v1155 = vpack.c.b16 %v997, %v995
        %v1156 = vpack.c.b16 %v1000, %v998
        %v1157 = vpack.c.b16 %v1001, %v999
        %v1158 = vpack.c.b16 %v1004, %v1002
        %v1159 = vpack.c.b16 %v1005, %v1003
        %v1160 = vpack.c.b16 %v1008, %v1006
        %v1161 = vpack.c.b16 %v1009, %v1007
        %v1162 = vpack.c.b16 %v1012, %v1010
        %v1163 = vpack.c.b16 %v1013, %v1011
        %v1164 = vpack.c.b16 %v1016, %v1014
        %v1165 = vpack.c.b16 %v1017, %v1015
        %v1166 = vpack.c.b16 %v1020, %v1018
        %v1167 = vpack.c.b16 %v1021, %v1019
        %v1168 = vpack.c.b16 %v1024, %v1022
        %v1169 = vpack.c.b16 %v1025, %v1023
        %v1170 = vpack.c.b16 %v1028, %v1026
        %v1171 = vpack.c.b16 %v1029, %v1027
        %v1172 = vpack.c.b16 %v1032, %v1030
        %v1173 = vpack.c.b16 %v1033, %v1031
        %v1174 = vpack.c.b16 %v1036, %v1034
        %v1175 = vpack.c.b16 %v1037, %v1035
        %v1176 = vpack.c.b16 %v1040, %v1038
        %v1177 = vpack.c.b16 %v1041, %v1039
        %v1178 = vpack.c.b16 %v1044, %v1042
        %v1179 = vpack.c.b16 %v1045, %v1043
        %v1180 = vpack.c.b16 %v1048, %v1046
        %v1181 = vpack.c.b16 %v1049, %v1047
        %v1182 = vpack.c.b16 %v1052, %v1050
        %v1183 = vpack.c.b16 %v1053, %v1051
        %v1184 = vpack.c.b16 %v1056, %v1054
        %v1185 = vpack.c.b16 %v1057, %v1055
        %v1186 = vpack.c.b16 %v1060, %v1058
        %v1187 = vpack.c.b16 %v1061, %v1059
        %v1188 = vpack.c.b16 %v1064, %v1062
        %v1189 = vpack.c.b16 %v1065, %v1063
        %v1190 = vpack.c.b16 %v1068, %v1066
        %v1191 = vpack.c.b16 %v1069, %v1067
        %v1192 = vpack.c.b16 %v1072, %v1070
        %v1193 = vpack.c.b16 %v1073, %v1071
        %v1194 = vpack.c.b16 %v1076, %v1074
        %v1195 = vpack.c.b16 %v1077, %v1075
        %v1196 = vpack.c.b16 %v1080, %v1078
        %v1197 = vpack.c.b16 %v1081, %v1079
        %v1198 = vpack.c.b16 %v1084, %v1082
        %v1199 = vpack.c.b16 %v1085, %v1083
        %v1200 = vpack.c.b16 %v1088, %v1086
        %v1201 = vpack.c.b16 %v1089, %v1087
        %1314 = vmatprep.subr.bf16.mxu0 %v1105
        %1315 = vmatpush1.bf16.msra.mxu0 %v1104
        %1316 = vmatprep.subr.bf16.mxu0 %v1103
        %1317 = vmatpush1.bf16.msra.mxu0 %v1102
        %1318 = vmatprep.subr.bf16.mxu0 %v1101
        %1319 = vmatpush1.bf16.msra.mxu0 %v1100
        %1320 = vmatprep.subr.bf16.mxu0 %v1099
        %1321 = vmatpush1.bf16.msra.mxu0 %v1098
        %1322 = vmatprep.subr.bf16.mxu0 %v1097
        %1323 = vmatpush1.bf16.msra.mxu0 %v1096
        %1324 = vmatprep.subr.bf16.mxu0 %v1095
        %1325 = vmatpush1.bf16.msra.mxu0 %v1094
        %1326 = vmatprep.subr.bf16.mxu0 %v1093
        %1327 = vmatpush1.bf16.msra.mxu0 %v1092
        %1328 = vmatprep.subr.bf16.mxu0 %v1091
        %1329 = vmatpush1.bf16.msra.mxu0 %v1090
        %1330 = vmatprep.subr.bf16.mxu0 %v1121
        %1331 = vmatpush2.bf16.msra.mxu0 %v1120
        %1332 = vmatprep.subr.bf16.mxu0 %v1119
        %1333 = vmatpush2.bf16.msra.mxu0 %v1118
        %1334 = vmatprep.subr.bf16.mxu0 %v1117
        %1335 = vmatpush2.bf16.msra.mxu0 %v1116
        %1336 = vmatprep.subr.bf16.mxu0 %v1115
        %1337 = vmatpush2.bf16.msra.mxu0 %v1114
        %1338 = vmatprep.subr.bf16.mxu0 %v1113
        %1339 = vmatpush2.bf16.msra.mxu0 %v1112
        %1340 = vmatprep.subr.bf16.mxu0 %v1111
        %1341 = vmatpush2.bf16.msra.mxu0 %v1110
        %1342 = vmatprep.subr.bf16.mxu0 %v1109
        %1343 = vmatpush2.bf16.msra.mxu0 %v1108
        %1344 = vmatprep.subr.bf16.mxu0 %v1107
        %1345 = vmatpush2.bf16.msra.mxu0 %v1106
        %1346 = vmatprep.mubr.bf16.mxu0 %v643
        %1347 = vmatmul.mubr.bf16.gmra.mxu0 %v642
        %v1348 = vpop.f32.mrf.mxu0
        %v1349 = vadd.f32 %v459, %v1348
        %v1350 = vpop.f32.mrf.mxu0
        %v1351 = vadd.f32 %v463, %v1350
        %v1352 = vpop.f32.mrf.mxu0
        %v1353 = vadd.f32 %v459, %v1352
        %v1354 = vpop.f32.mrf.mxu0
        %v1355 = vadd.f32 %v463, %v1354
        %1356 = vmatprep.mubr.bf16.mxu0 %v650
        %1357 = vmatmul.mubr.bf16.gmra.mxu0 %v649
        %v1358 = vpop.f32.mrf.mxu0
        %v1359 = vadd.f32 %v459, %v1358
        %v1360 = vpop.f32.mrf.mxu0
        %v1361 = vadd.f32 %v463, %v1360
        %v1362 = vpop.f32.mrf.mxu0
        %v1363 = vadd.f32 %v459, %v1362
        %v1364 = vpop.f32.mrf.mxu0
        %v1365 = vadd.f32 %v463, %v1364
        %1366 = vmatprep.mubr.bf16.mxu0 %v657
        %1367 = vmatmul.mubr.bf16.gmra.mxu0 %v656
        %v1368 = vpop.f32.mrf.mxu0
        %v1369 = vadd.f32 %v459, %v1368
        %v1370 = vpop.f32.mrf.mxu0
        %v1371 = vadd.f32 %v463, %v1370
        %v1372 = vpop.f32.mrf.mxu0
        %v1373 = vadd.f32 %v459, %v1372
        %v1374 = vpop.f32.mrf.mxu0
        %v1375 = vadd.f32 %v463, %v1374
        %1376 = vmatprep.mubr.bf16.mxu0 %v664
        %1377 = vmatmul.mubr.bf16.gmra.mxu0 %v663
        %v1378 = vpop.f32.mrf.mxu0
        %v1379 = vadd.f32 %v459, %v1378
        %v1380 = vpop.f32.mrf.mxu0
        %v1381 = vadd.f32 %v463, %v1380
        %v1382 = vpop.f32.mrf.mxu0
        %v1383 = vadd.f32 %v459, %v1382
        %v1384 = vpop.f32.mrf.mxu0
        %v1385 = vadd.f32 %v463, %v1384
        %1386 = vmatprep.mubr.bf16.mxu0 %v671
        %1387 = vmatmul.mubr.bf16.gmra.mxu0 %v670
        %v1388 = vpop.f32.mrf.mxu0
        %v1389 = vadd.f32 %v459, %v1388
        %v1390 = vpop.f32.mrf.mxu0
        %v1391 = vadd.f32 %v463, %v1390
        %v1392 = vpop.f32.mrf.mxu0
        %v1393 = vadd.f32 %v459, %v1392
        %v1394 = vpop.f32.mrf.mxu0
        %v1395 = vadd.f32 %v463, %v1394
        %1396 = vmatprep.mubr.bf16.mxu0 %v678
        %1397 = vmatmul.mubr.bf16.gmra.mxu0 %v677
        %v1398 = vpop.f32.mrf.mxu0
        %v1399 = vadd.f32 %v459, %v1398
        %v1400 = vpop.f32.mrf.mxu0
        %v1401 = vadd.f32 %v463, %v1400
        %v1402 = vpop.f32.mrf.mxu0
        %v1403 = vadd.f32 %v459, %v1402
        %v1404 = vpop.f32.mrf.mxu0
        %v1405 = vadd.f32 %v463, %v1404
        %1406 = vmatprep.mubr.bf16.mxu0 %v685
        %1407 = vmatmul.mubr.bf16.gmra.mxu0 %v684
        %v1408 = vpop.f32.mrf.mxu0
        %v1409 = vadd.f32 %v459, %v1408
        %v1410 = vpop.f32.mrf.mxu0
        %v1411 = vadd.f32 %v463, %v1410
        %v1412 = vpop.f32.mrf.mxu0
        %v1413 = vadd.f32 %v459, %v1412
        %v1414 = vpop.f32.mrf.mxu0
        %v1415 = vadd.f32 %v463, %v1414
        %1416 = vmatprep.mubr.bf16.mxu0 %v692
        %1417 = vmatmul.mubr.bf16.gmra.mxu0 %v691
        %v1418 = vpop.f32.mrf.mxu0
        %v1419 = vadd.f32 %v459, %v1418
        %v1420 = vpop.f32.mrf.mxu0
        %v1421 = vadd.f32 %v463, %v1420
        %v1422 = vpop.f32.mrf.mxu0
        %v1423 = vadd.f32 %v459, %v1422
        %v1424 = vpop.f32.mrf.mxu0
        %v1425 = vadd.f32 %v463, %v1424
        %1426 = vdwg.mxu0
        %1427 = vmatprep.subr.bf16.mxu0 %v1137
        %1428 = vmatpush1.bf16.msra.mxu0 %v1136
        %1429 = vmatprep.subr.bf16.mxu0 %v1135
        %1430 = vmatpush1.bf16.msra.mxu0 %v1134
        %1431 = vmatprep.subr.bf16.mxu0 %v1133
        %1432 = vmatpush1.bf16.msra.mxu0 %v1132
        %1433 = vmatprep.subr.bf16.mxu0 %v1131
        %1434 = vmatpush1.bf16.msra.mxu0 %v1130
        %1435 = vmatprep.subr.bf16.mxu0 %v1129
        %1436 = vmatpush1.bf16.msra.mxu0 %v1128
        %1437 = vmatprep.subr.bf16.mxu0 %v1127
        %1438 = vmatpush1.bf16.msra.mxu0 %v1126
        %1439 = vmatprep.subr.bf16.mxu0 %v1125
        %1440 = vmatpush1.bf16.msra.mxu0 %v1124
        %1441 = vmatprep.subr.bf16.mxu0 %v1123
        %1442 = vmatpush1.bf16.msra.mxu0 %v1122
        %1443 = vmatprep.subr.bf16.mxu0 %v1153
        %1444 = vmatpush2.bf16.msra.mxu0 %v1152
        %1445 = vmatprep.subr.bf16.mxu0 %v1151
        %1446 = vmatpush2.bf16.msra.mxu0 %v1150
        %1447 = vmatprep.subr.bf16.mxu0 %v1149
        %1448 = vmatpush2.bf16.msra.mxu0 %v1148
        %1449 = vmatprep.subr.bf16.mxu0 %v1147
        %1450 = vmatpush2.bf16.msra.mxu0 %v1146
        %1451 = vmatprep.subr.bf16.mxu0 %v1145
        %1452 = vmatpush2.bf16.msra.mxu0 %v1144
        %1453 = vmatprep.subr.bf16.mxu0 %v1143
        %1454 = vmatpush2.bf16.msra.mxu0 %v1142
        %1455 = vmatprep.subr.bf16.mxu0 %v1141
        %1456 = vmatpush2.bf16.msra.mxu0 %v1140
        %1457 = vmatprep.subr.bf16.mxu0 %v1139
        %1458 = vmatpush2.bf16.msra.mxu0 %v1138
        %1459 = vmatprep.mubr.bf16.mxu0 %v645
        %1460 = vmatmul.mubr.bf16.gmra.mxu0 %v644
        %v1461 = vpop.f32.mrf.mxu0
        %v1462 = vadd.f32 %v1349, %v1461
        %v1463 = vpop.f32.mrf.mxu0
        %v1464 = vadd.f32 %v1351, %v1463
        %v1465 = vpop.f32.mrf.mxu0
        %v1466 = vadd.f32 %v1353, %v1465
        %v1467 = vpop.f32.mrf.mxu0
        %v1468 = vadd.f32 %v1355, %v1467
        %1469 = vmatprep.mubr.bf16.mxu0 %v652
        %1470 = vmatmul.mubr.bf16.gmra.mxu0 %v651
        %v1471 = vpop.f32.mrf.mxu0
        %v1472 = vadd.f32 %v1359, %v1471
        %v1473 = vpop.f32.mrf.mxu0
        %v1474 = vadd.f32 %v1361, %v1473
        %v1475 = vpop.f32.mrf.mxu0
        %v1476 = vadd.f32 %v1363, %v1475
        %v1477 = vpop.f32.mrf.mxu0
        %v1478 = vadd.f32 %v1365, %v1477
        %1479 = vmatprep.mubr.bf16.mxu0 %v659
        %1480 = vmatmul.mubr.bf16.gmra.mxu0 %v658
        %v1481 = vpop.f32.mrf.mxu0
        %v1482 = vadd.f32 %v1369, %v1481
        %v1483 = vpop.f32.mrf.mxu0
        %v1484 = vadd.f32 %v1371, %v1483
        %v1485 = vpop.f32.mrf.mxu0
        %v1486 = vadd.f32 %v1373, %v1485
        %v1487 = vpop.f32.mrf.mxu0
        %v1488 = vadd.f32 %v1375, %v1487
        %1489 = vmatprep.mubr.bf16.mxu0 %v666
        %1490 = vmatmul.mubr.bf16.gmra.mxu0 %v665
        %v1491 = vpop.f32.mrf.mxu0
        %v1492 = vadd.f32 %v1379, %v1491
        %v1493 = vpop.f32.mrf.mxu0
        %v1494 = vadd.f32 %v1381, %v1493
        %v1495 = vpop.f32.mrf.mxu0
        %v1496 = vadd.f32 %v1383, %v1495
        %v1497 = vpop.f32.mrf.mxu0
        %v1498 = vadd.f32 %v1385, %v1497
        %1499 = vmatprep.mubr.bf16.mxu0 %v673
        %1500 = vmatmul.mubr.bf16.gmra.mxu0 %v672
        %v1501 = vpop.f32.mrf.mxu0
        %v1502 = vadd.f32 %v1389, %v1501
        %v1503 = vpop.f32.mrf.mxu0
        %v1504 = vadd.f32 %v1391, %v1503
        %v1505 = vpop.f32.mrf.mxu0
        %v1506 = vadd.f32 %v1393, %v1505
        %v1507 = vpop.f32.mrf.mxu0
        %v1508 = vadd.f32 %v1395, %v1507
        %1509 = vmatprep.mubr.bf16.mxu0 %v680
        %1510 = vmatmul.mubr.bf16.gmra.mxu0 %v679
        %v1511 = vpop.f32.mrf.mxu0
        %v1512 = vadd.f32 %v1399, %v1511
        %v1513 = vpop.f32.mrf.mxu0
        %v1514 = vadd.f32 %v1401, %v1513
        %v1515 = vpop.f32.mrf.mxu0
        %v1516 = vadd.f32 %v1403, %v1515
        %v1517 = vpop.f32.mrf.mxu0
        %v1518 = vadd.f32 %v1405, %v1517
        %1519 = vmatprep.mubr.bf16.mxu0 %v687
        %1520 = vmatmul.mubr.bf16.gmra.mxu0 %v686
        %v1521 = vpop.f32.mrf.mxu0
        %v1522 = vadd.f32 %v1409, %v1521
        %v1523 = vpop.f32.mrf.mxu0
        %v1524 = vadd.f32 %v1411, %v1523
        %v1525 = vpop.f32.mrf.mxu0
        %v1526 = vadd.f32 %v1413, %v1525
        %v1527 = vpop.f32.mrf.mxu0
        %v1528 = vadd.f32 %v1415, %v1527
        %1529 = vmatprep.mubr.bf16.mxu0 %v694
        %1530 = vmatmul.mubr.bf16.gmra.mxu0 %v693
        %v1531 = vpop.f32.mrf.mxu0
        %v1532 = vadd.f32 %v1419, %v1531
        %v1533 = vpop.f32.mrf.mxu0
        %v1534 = vadd.f32 %v1421, %v1533
        %v1535 = vpop.f32.mrf.mxu0
        %v1536 = vadd.f32 %v1423, %v1535
        %v1537 = vpop.f32.mrf.mxu0
        %v1538 = vadd.f32 %v1425, %v1537
        %1539 = vdwg.mxu0
        %1540 = vmatprep.subr.bf16.mxu0 %v1169
        %1541 = vmatpush1.bf16.msra.mxu0 %v1168
        %1542 = vmatprep.subr.bf16.mxu0 %v1167
        %1543 = vmatpush1.bf16.msra.mxu0 %v1166
        %1544 = vmatprep.subr.bf16.mxu0 %v1165
        %1545 = vmatpush1.bf16.msra.mxu0 %v1164
        %1546 = vmatprep.subr.bf16.mxu0 %v1163
        %1547 = vmatpush1.bf16.msra.mxu0 %v1162
        %1548 = vmatprep.subr.bf16.mxu0 %v1161
        %1549 = vmatpush1.bf16.msra.mxu0 %v1160
        %1550 = vmatprep.subr.bf16.mxu0 %v1159
        %1551 = vmatpush1.bf16.msra.mxu0 %v1158
        %1552 = vmatprep.subr.bf16.mxu0 %v1157
        %1553 = vmatpush1.bf16.msra.mxu0 %v1156
        %1554 = vmatprep.subr.bf16.mxu0 %v1155
        %1555 = vmatpush1.bf16.msra.mxu0 %v1154
        %1556 = vmatprep.subr.bf16.mxu0 %v1185
        %1557 = vmatpush2.bf16.msra.mxu0 %v1184
        %1558 = vmatprep.subr.bf16.mxu0 %v1183
        %1559 = vmatpush2.bf16.msra.mxu0 %v1182
        %1560 = vmatprep.subr.bf16.mxu0 %v1181
        %1561 = vmatpush2.bf16.msra.mxu0 %v1180
        %1562 = vmatprep.subr.bf16.mxu0 %v1179
        %1563 = vmatpush2.bf16.msra.mxu0 %v1178
        %1564 = vmatprep.subr.bf16.mxu0 %v1177
        %1565 = vmatpush2.bf16.msra.mxu0 %v1176
        %1566 = vmatprep.subr.bf16.mxu0 %v1175
        %1567 = vmatpush2.bf16.msra.mxu0 %v1174
        %1568 = vmatprep.subr.bf16.mxu0 %v1173
        %1569 = vmatpush2.bf16.msra.mxu0 %v1172
        %1570 = vmatprep.subr.bf16.mxu0 %v1171
        %1571 = vmatpush2.bf16.msra.mxu0 %v1170
        %1572 = vmatprep.mubr.bf16.mxu0 %v647
        %1573 = vmatmul.mubr.bf16.gmra.mxu0 %v646
        %v1574 = vpop.f32.mrf.mxu0
        %v1575 = vadd.f32 %v1462, %v1574
        %v1576 = vpop.f32.mrf.mxu0
        %v1577 = vadd.f32 %v1464, %v1576
        %v1578 = vpop.f32.mrf.mxu0
        %v1579 = vadd.f32 %v1466, %v1578
        %v1580 = vpop.f32.mrf.mxu0
        %v1581 = vadd.f32 %v1468, %v1580
        %1582 = vmatprep.mubr.bf16.mxu0 %v654
        %1583 = vmatmul.mubr.bf16.gmra.mxu0 %v653
        %v1584 = vpop.f32.mrf.mxu0
        %v1585 = vadd.f32 %v1472, %v1584
        %v1586 = vpop.f32.mrf.mxu0
        %v1587 = vadd.f32 %v1474, %v1586
        %v1588 = vpop.f32.mrf.mxu0
        %v1589 = vadd.f32 %v1476, %v1588
        %v1590 = vpop.f32.mrf.mxu0
        %v1591 = vadd.f32 %v1478, %v1590
        %1592 = vmatprep.mubr.bf16.mxu0 %v661
        %1593 = vmatmul.mubr.bf16.gmra.mxu0 %v660
        %v1594 = vpop.f32.mrf.mxu0
        %v1595 = vadd.f32 %v1482, %v1594
        %v1596 = vpop.f32.mrf.mxu0
        %v1597 = vadd.f32 %v1484, %v1596
        %v1598 = vpop.f32.mrf.mxu0
        %v1599 = vadd.f32 %v1486, %v1598
        %v1600 = vpop.f32.mrf.mxu0
        %v1601 = vadd.f32 %v1488, %v1600
        %1602 = vmatprep.mubr.bf16.mxu0 %v668
        %1603 = vmatmul.mubr.bf16.gmra.mxu0 %v667
        %v1604 = vpop.f32.mrf.mxu0
        %v1605 = vadd.f32 %v1492, %v1604
        %v1606 = vpop.f32.mrf.mxu0
        %v1607 = vadd.f32 %v1494, %v1606
        %v1608 = vpop.f32.mrf.mxu0
        %v1609 = vadd.f32 %v1496, %v1608
        %v1610 = vpop.f32.mrf.mxu0
        %v1611 = vadd.f32 %v1498, %v1610
        %1612 = vmatprep.mubr.bf16.mxu0 %v675
        %1613 = vmatmul.mubr.bf16.gmra.mxu0 %v674
        %v1614 = vpop.f32.mrf.mxu0
        %v1615 = vadd.f32 %v1502, %v1614
        %v1616 = vpop.f32.mrf.mxu0
        %v1617 = vadd.f32 %v1504, %v1616
        %v1618 = vpop.f32.mrf.mxu0
        %v1619 = vadd.f32 %v1506, %v1618
        %v1620 = vpop.f32.mrf.mxu0
        %v1621 = vadd.f32 %v1508, %v1620
        %1622 = vmatprep.mubr.bf16.mxu0 %v682
        %1623 = vmatmul.mubr.bf16.gmra.mxu0 %v681
        %v1624 = vpop.f32.mrf.mxu0
        %v1625 = vadd.f32 %v1512, %v1624
        %v1626 = vpop.f32.mrf.mxu0
        %v1627 = vadd.f32 %v1514, %v1626
        %v1628 = vpop.f32.mrf.mxu0
        %v1629 = vadd.f32 %v1516, %v1628
        %v1630 = vpop.f32.mrf.mxu0
        %v1631 = vadd.f32 %v1518, %v1630
        %1632 = vmatprep.mubr.bf16.mxu0 %v689
        %1633 = vmatmul.mubr.bf16.gmra.mxu0 %v688
        %v1634 = vpop.f32.mrf.mxu0
        %v1635 = vadd.f32 %v1522, %v1634
        %v1636 = vpop.f32.mrf.mxu0
        %v1637 = vadd.f32 %v1524, %v1636
        %v1638 = vpop.f32.mrf.mxu0
        %v1639 = vadd.f32 %v1526, %v1638
        %v1640 = vpop.f32.mrf.mxu0
        %v1641 = vadd.f32 %v1528, %v1640
        %1642 = vmatprep.mubr.bf16.mxu0 %v696
        %1643 = vmatmul.mubr.bf16.gmra.mxu0 %v695
        %v1644 = vpop.f32.mrf.mxu0
        %v1645 = vadd.f32 %v1532, %v1644
        %v1646 = vpop.f32.mrf.mxu0
        %v1647 = vadd.f32 %v1534, %v1646
        %v1648 = vpop.f32.mrf.mxu0
        %v1649 = vadd.f32 %v1536, %v1648
        %v1650 = vpop.f32.mrf.mxu0
        %v1651 = vadd.f32 %v1538, %v1650
        %1652 = vdwg.mxu0
        %1653 = vmatprep.subr.bf16.mxu0 %v1201
        %1654 = vmatpush1.bf16.msra.mxu0 %v1200
        %1655 = vmatprep.subr.bf16.mxu0 %v1199
        %1656 = vmatpush1.bf16.msra.mxu0 %v1198
        %1657 = vmatprep.subr.bf16.mxu0 %v1197
        %1658 = vmatpush1.bf16.msra.mxu0 %v1196
        %1659 = vmatprep.subr.bf16.mxu0 %v1195
        %1660 = vmatpush1.bf16.msra.mxu0 %v1194
        %1661 = vmatprep.subr.bf16.mxu0 %v1193
        %1662 = vmatpush1.bf16.msra.mxu0 %v1192
        %1663 = vmatprep.subr.bf16.mxu0 %v1191
        %1664 = vmatpush1.bf16.msra.mxu0 %v1190
        %1665 = vmatprep.subr.bf16.mxu0 %v1189
        %1666 = vmatpush1.bf16.msra.mxu0 %v1188
        %1667 = vmatprep.subr.bf16.mxu0 %v1187
        %1668 = vmatpush1.bf16.msra.mxu0 %v1186
        %1669 = vmatprep.subr.bf16.mxu0 0
        %1670 = vmatpush2.bf16.msra.mxu0 0
        %1671 = vmatprep.subr.bf16.mxu0 0
        %1672 = vmatpush2.bf16.msra.mxu0 0
        %1673 = vmatprep.subr.bf16.mxu0 0
        %1674 = vmatpush2.bf16.msra.mxu0 0
        %1675 = vmatprep.subr.bf16.mxu0 0
        %1676 = vmatpush2.bf16.msra.mxu0 0
        %1677 = vmatprep.subr.bf16.mxu0 0
        %1678 = vmatpush2.bf16.msra.mxu0 0
        %1679 = vmatprep.subr.bf16.mxu0 0
        %1680 = vmatpush2.bf16.msra.mxu0 0
        %1681 = vmatprep.subr.bf16.mxu0 0
        %1682 = vmatpush2.bf16.msra.mxu0 0
        %1683 = vmatprep.subr.bf16.mxu0 0
        %1684 = vmatpush2.bf16.msra.mxu0 0
        %1685 = vmatprep.mubr.bf16.mxu0 0
        %1686 = vmatmul.mubr.bf16.gmra.mxu0 %v648
        %v1687 = vpop.f32.mrf.mxu0
        %v1688 = vadd.f32 %v1575, %v1687
        %v1689 = vpop.f32.mrf.mxu0
        %v1690 = vadd.f32 %v1577, %v1689
        %v1691 = vpop.f32.mrf.mxu0
        %v1692 = vadd.f32 %v1579, %v1691
        %v1693 = vpop.f32.mrf.mxu0
        %v1694 = vadd.f32 %v1581, %v1693
        %1695 = vmatprep.mubr.bf16.mxu0 0
        %1696 = vmatmul.mubr.bf16.gmra.mxu0 %v655
        %v1697 = vpop.f32.mrf.mxu0
        %v1698 = vadd.f32 %v1585, %v1697
        %v1699 = vpop.f32.mrf.mxu0
        %v1700 = vadd.f32 %v1587, %v1699
        %v1701 = vpop.f32.mrf.mxu0
        %v1702 = vadd.f32 %v1589, %v1701
        %v1703 = vpop.f32.mrf.mxu0
        %v1704 = vadd.f32 %v1591, %v1703
        %1705 = vmatprep.mubr.bf16.mxu0 0
        %1706 = vmatmul.mubr.bf16.gmra.mxu0 %v662
        %v1707 = vpop.f32.mrf.mxu0
        %v1708 = vadd.f32 %v1595, %v1707
        %v1709 = vpop.f32.mrf.mxu0
        %v1710 = vadd.f32 %v1597, %v1709
        %v1711 = vpop.f32.mrf.mxu0
        %v1712 = vadd.f32 %v1599, %v1711
        %v1713 = vpop.f32.mrf.mxu0
        %v1714 = vadd.f32 %v1601, %v1713
        %1715 = vmatprep.mubr.bf16.mxu0 0
        %1716 = vmatmul.mubr.bf16.gmra.mxu0 %v669
        %v1717 = vpop.f32.mrf.mxu0
        %v1718 = vadd.f32 %v1605, %v1717
        %v1719 = vpop.f32.mrf.mxu0
        %v1720 = vadd.f32 %v1607, %v1719
        %v1721 = vpop.f32.mrf.mxu0
        %v1722 = vadd.f32 %v1609, %v1721
        %v1723 = vpop.f32.mrf.mxu0
        %v1724 = vadd.f32 %v1611, %v1723
        %1725 = vmatprep.mubr.bf16.mxu0 0
        %1726 = vmatmul.mubr.bf16.gmra.mxu0 %v676
        %v1727 = vpop.f32.mrf.mxu0
        %v1728 = vadd.f32 %v1615, %v1727
        %v1729 = vpop.f32.mrf.mxu0
        %v1730 = vadd.f32 %v1617, %v1729
        %v1731 = vpop.f32.mrf.mxu0
        %v1732 = vadd.f32 %v1619, %v1731
        %v1733 = vpop.f32.mrf.mxu0
        %v1734 = vadd.f32 %v1621, %v1733
        %1735 = vmatprep.mubr.bf16.mxu0 0
        %1736 = vmatmul.mubr.bf16.gmra.mxu0 %v683
        %v1737 = vpop.f32.mrf.mxu0
        %v1738 = vadd.f32 %v1625, %v1737
        %v1739 = vpop.f32.mrf.mxu0
        %v1740 = vadd.f32 %v1627, %v1739
        %v1741 = vpop.f32.mrf.mxu0
        %v1742 = vadd.f32 %v1629, %v1741
        %v1743 = vpop.f32.mrf.mxu0
        %v1744 = vadd.f32 %v1631, %v1743
        %1745 = vmatprep.mubr.bf16.mxu0 0
        %1746 = vmatmul.mubr.bf16.gmra.mxu0 %v690
        %v1747 = vpop.f32.mrf.mxu0
        %v1748 = vadd.f32 %v1635, %v1747
        %v1749 = vpop.f32.mrf.mxu0
        %v1750 = vadd.f32 %v1637, %v1749
        %v1751 = vpop.f32.mrf.mxu0
        %v1752 = vadd.f32 %v1639, %v1751
        %v1753 = vpop.f32.mrf.mxu0
        %v1754 = vadd.f32 %v1641, %v1753
        %1755 = vmatprep.mubr.bf16.mxu0 0
        %1756 = vmatmul.mubr.bf16.gmra.mxu0 %v697
        %v1757 = vpop.f32.mrf.mxu0
        %v1758 = vadd.f32 %v1645, %v1757
        %v1759 = vpop.f32.mrf.mxu0
        %v1760 = vadd.f32 %v1647, %v1759
        %v1761 = vpop.f32.mrf.mxu0
        %v1762 = vadd.f32 %v1649, %v1761
        %v1763 = vpop.f32.mrf.mxu0
        %v1764 = vadd.f32 %v1651, %v1763
        %1765 = vdwg.mxu0
        %v1766 = vmax.f32 %v1688, 0.0
        %v1767 = vmax.f32 %v1690, 0.0
        %v1768 = vmax.f32 %v1692, 0.0
        %v1769 = vmax.f32 %v1694, 0.0
        %v1770 = vmax.f32 %v1698, 0.0
        %v1771 = vmax.f32 %v1700, 0.0
        %v1772 = vmax.f32 %v1702, 0.0
        %v1773 = vmax.f32 %v1704, 0.0
        %v1774 = vmax.f32 %v1708, 0.0
        %v1775 = vmax.f32 %v1710, 0.0
        %v1776 = vmax.f32 %v1712, 0.0
        %v1777 = vmax.f32 %v1714, 0.0
        %v1778 = vmax.f32 %v1718, 0.0
        %v1779 = vmax.f32 %v1720, 0.0
        %v1780 = vmax.f32 %v1722, 0.0
        %v1781 = vmax.f32 %v1724, 0.0
        %v1782 = vmax.f32 %v1728, 0.0
        %v1783 = vmax.f32 %v1730, 0.0
        %v1784 = vmax.f32 %v1732, 0.0
        %v1785 = vmax.f32 %v1734, 0.0
        %v1786 = vmax.f32 %v1738, 0.0
        %v1787 = vmax.f32 %v1740, 0.0
        %v1788 = vmax.f32 %v1742, 0.0
        %v1789 = vmax.f32 %v1744, 0.0
        %v1790 = vmax.f32 %v1748, 0.0
        %v1791 = vmax.f32 %v1750, 0.0
        %v1792 = vmax.f32 %v1752, 0.0
        %v1793 = vmax.f32 %v1754, 0.0
        %v1794 = vmax.f32 %v1758, 0.0
        %v1795 = vmax.f32 %v1760, 0.0
        %v1796 = vmax.f32 %v1762, 0.0
        %v1797 = vmax.f32 %v1764, 0.0
        %v1798 = vpack.c.bf16 %v1768, %v1766
        %v1799 = vpack.c.bf16 %v1769, %v1767
        %v1800 = vpack.c.bf16 %v1772, %v1770
        %v1801 = vpack.c.bf16 %v1773, %v1771
        %v1802 = vpack.c.bf16 %v1776, %v1774
        %v1803 = vpack.c.bf16 %v1777, %v1775
        %v1804 = vpack.c.bf16 %v1780, %v1778
        %v1805 = vpack.c.bf16 %v1781, %v1779
        %v1806 = vpack.c.bf16 %v1784, %v1782
        %v1807 = vpack.c.bf16 %v1785, %v1783
        %v1808 = vpack.c.bf16 %v1788, %v1786
        %v1809 = vpack.c.bf16 %v1789, %v1787
        %v1810 = vpack.c.bf16 %v1792, %v1790
        %v1811 = vpack.c.bf16 %v1793, %v1791
        %v1812 = vpack.c.bf16 %v1796, %v1794
        %v1813 = vpack.c.bf16 %v1797, %v1795
        %v1814 = vld [vmem:[%s4 + $0x1] sm:$0x1]
        %v1815 = vld [vmem:[#allocation6] sm:$0xf]
        %v1816 = vld [vmem:[#allocation6 + $0x4] sm:$0xf]
        %v1817 = vld [vmem:[#allocation6 + $0x8] sm:$0xf]
        %v1818 = vld [vmem:[#allocation6 + $0xc] sm:$0xf]
        %v1819 = vld [vmem:[#allocation6 + $0x10] sm:$0xf]
        %v1820 = vld [vmem:[#allocation6 + $0x14] sm:$0xf]
        %v1821 = vld [vmem:[#allocation6 + $0x18] sm:$0xf]
        %v1822 = vld [vmem:[#allocation6 + $0x1c] sm:$0xf]
        %v1823 = vld [vmem:[#allocation6 + $0x20] sm:$0xf]
        %v1824 = vld [vmem:[#allocation6 + $0x24] sm:$0xf]
        %v1825 = vld [vmem:[#allocation6 + $0x28] sm:$0xf]
        %v1826 = vld [vmem:[#allocation6 + $0x2c] sm:$0xf]
        %v1827 = vld [vmem:[#allocation6 + $0x30] sm:$0xf]
        %v1828 = vld [vmem:[#allocation6 + $0x34] sm:$0xf]
        %v1829 = vld [vmem:[#allocation6 + $0x38] sm:$0xf]
        %v1830 = vld [vmem:[#allocation6 + $0x3c] sm:$0xf]
        %v1831 = vld [vmem:[#allocation6 + $0x40] sm:$0xf]
        %v1832 = vld [vmem:[#allocation6 + $0x44] sm:$0xf]
        %v1833 = vld [vmem:[#allocation6 + $0x48] sm:$0xf]
        %v1834 = vld [vmem:[#allocation6 + $0x4c] sm:$0xf]
        %v1835 = vld [vmem:[#allocation6 + $0x50] sm:$0xf]
        %v1836 = vld [vmem:[#allocation6 + $0x54] sm:$0xf]
        %v1837 = vld [vmem:[#allocation6 + $0x58] sm:$0xf]
        %v1838 = vld [vmem:[#allocation6 + $0x5c] sm:$0xf]
        %v1839 = vld [vmem:[#allocation6 + $0x60] sm:$0xf]
        %v1840 = vld [vmem:[#allocation6 + $0x64] sm:$0xf]
        %v1841 = vld [vmem:[#allocation6 + $0x68] sm:$0xf]
        %v1842 = vld [vmem:[#allocation6 + $0x6c] sm:$0xf]
        %v1843 = vld [vmem:[#allocation6 + $0x70] sm:$0xf]
        %v1844 = vld [vmem:[#allocation6 + $0x74] sm:$0xf]
        %v1845 = vld [vmem:[#allocation6 + $0x78] sm:$0xf]
        %v1846 = vld [vmem:[#allocation6 + $0x7c] sm:$0xf]
        %v1847 = vlaneseq
        %v1848 = vshrl.u32 %v1847, 7
        %v1849 = vsub.s32 0, %v1848
        %v1850 = vrot.slane %v1814, %v1849
        %v1883 = vunpack.c.l.b16 %v1815
        %v1884 = vunpack.c.l.b16 %v1816
        %v1885 = vunpack.c.l.b16 %v1817
        %v1886 = vunpack.c.l.b16 %v1818
        %v1887 = vunpack.c.l.b16 %v1819
        %v1888 = vunpack.c.l.b16 %v1820
        %v1889 = vunpack.c.l.b16 %v1821
        %v1890 = vunpack.c.l.b16 %v1822
        %v1891 = vunpack.c.l.b16 %v1823
        %v1892 = vunpack.c.l.b16 %v1824
        %v1893 = vunpack.c.l.b16 %v1825
        %v1894 = vunpack.c.l.b16 %v1826
        %v1895 = vunpack.c.l.b16 %v1827
        %v1896 = vunpack.c.l.b16 %v1828
        %v1897 = vunpack.c.l.b16 %v1829
        %v1898 = vunpack.c.l.b16 %v1830
        %v1899 = vunpack.c.l.b16 %v1831
        %v1900 = vunpack.c.l.b16 %v1832
        %v1901 = vunpack.c.l.b16 %v1833
        %v1902 = vunpack.c.l.b16 %v1834
        %v1903 = vunpack.c.l.b16 %v1835
        %v1904 = vunpack.c.l.b16 %v1836
        %v1905 = vunpack.c.l.b16 %v1837
        %v1906 = vunpack.c.l.b16 %v1838
        %v1907 = vunpack.c.l.b16 %v1839
        %v1908 = vunpack.c.l.b16 %v1840
        %v1909 = vunpack.c.l.b16 %v1841
        %v1910 = vunpack.c.l.b16 %v1842
        %v1911 = vunpack.c.l.b16 %v1843
        %v1912 = vunpack.c.l.b16 %v1844
        %v1913 = vunpack.c.l.b16 %v1845
        %v1914 = vunpack.c.l.b16 %v1846
        %v1915 = vpack.c.b16 %v1884, %v1883
        %v1916 = vpack.c.b16 %v1886, %v1885
        %v1917 = vpack.c.b16 %v1888, %v1887
        %v1918 = vpack.c.b16 %v1890, %v1889
        %v1919 = vpack.c.b16 %v1892, %v1891
        %v1920 = vpack.c.b16 %v1894, %v1893
        %v1921 = vpack.c.b16 %v1896, %v1895
        %v1922 = vpack.c.b16 %v1898, %v1897
        %v1923 = vpack.c.b16 %v1900, %v1899
        %v1924 = vpack.c.b16 %v1902, %v1901
        %v1925 = vpack.c.b16 %v1904, %v1903
        %v1926 = vpack.c.b16 %v1906, %v1905
        %v1927 = vpack.c.b16 %v1908, %v1907
        %v1928 = vpack.c.b16 %v1910, %v1909
        %v1929 = vpack.c.b16 %v1912, %v1911
        %v1930 = vpack.c.b16 %v1914, %v1913
        %1947 = vmatprep.subr.bf16.mxu0 0
        %1948 = vmatpush1.bf16.msra.mxu0 %v1922
        %1949 = vmatprep.subr.bf16.mxu0 0
        %1950 = vmatpush1.bf16.msra.mxu0 %v1921
        %1951 = vmatprep.subr.bf16.mxu0 0
        %1952 = vmatpush1.bf16.msra.mxu0 %v1920
        %1953 = vmatprep.subr.bf16.mxu0 0
        %1954 = vmatpush1.bf16.msra.mxu0 %v1919
        %1955 = vmatprep.subr.bf16.mxu0 0
        %1956 = vmatpush1.bf16.msra.mxu0 %v1918
        %1957 = vmatprep.subr.bf16.mxu0 0
        %1958 = vmatpush1.bf16.msra.mxu0 %v1917
        %1959 = vmatprep.subr.bf16.mxu0 0
        %1960 = vmatpush1.bf16.msra.mxu0 %v1916
        %1961 = vmatprep.subr.bf16.mxu0 0
        %1962 = vmatpush1.bf16.msra.mxu0 %v1915
        %1963 = vmatprep.subr.bf16.mxu0 0
        %1964 = vmatpush2.bf16.msra.mxu0 %v1930
        %1965 = vmatprep.subr.bf16.mxu0 0
        %1966 = vmatpush2.bf16.msra.mxu0 %v1929
        %1967 = vmatprep.subr.bf16.mxu0 0
        %1968 = vmatpush2.bf16.msra.mxu0 %v1928
        %1969 = vmatprep.subr.bf16.mxu0 0
        %1970 = vmatpush2.bf16.msra.mxu0 %v1927
        %1971 = vmatprep.subr.bf16.mxu0 0
        %1972 = vmatpush2.bf16.msra.mxu0 %v1926
        %1973 = vmatprep.subr.bf16.mxu0 0
        %1974 = vmatpush2.bf16.msra.mxu0 %v1925
        %1975 = vmatprep.subr.bf16.mxu0 0
        %1976 = vmatpush2.bf16.msra.mxu0 %v1924
        %1977 = vmatprep.subr.bf16.mxu0 0
        %1978 = vmatpush2.bf16.msra.mxu0 %v1923
        %1979 = vmatprep.mubr.bf16.mxu0 %v1799
        %1980 = vmatmul.mubr.bf16.gmra.mxu0 %v1798
        %v1981 = vpop.f32.mrf.mxu0
        %v1982 = vadd.f32 %v1850, %v1981
        %v1983 = vpop.f32.mrf.mxu0
        %v1984 = vpop.f32.mrf.mxu0
        %v1985 = vadd.f32 %v1850, %v1984
        %v1986 = vpop.f32.mrf.mxu0
        %1987 = vmatprep.mubr.bf16.mxu0 %v1801
        %1988 = vmatmul.mubr.bf16.gmra.mxu0 %v1800
        %v1989 = vpop.f32.mrf.mxu0
        %v1990 = vadd.f32 %v1850, %v1989
        %v1991 = vpop.f32.mrf.mxu0
        %v1992 = vpop.f32.mrf.mxu0
        %v1993 = vadd.f32 %v1850, %v1992
        %v1994 = vpop.f32.mrf.mxu0
        %1995 = vmatprep.mubr.bf16.mxu0 %v1803
        %1996 = vmatmul.mubr.bf16.gmra.mxu0 %v1802
        %v1997 = vpop.f32.mrf.mxu0
        %v1998 = vadd.f32 %v1850, %v1997
        %v1999 = vpop.f32.mrf.mxu0
        %v2000 = vpop.f32.mrf.mxu0
        %v2001 = vadd.f32 %v1850, %v2000
        %v2002 = vpop.f32.mrf.mxu0
        %2003 = vmatprep.mubr.bf16.mxu0 %v1805
        %2004 = vmatmul.mubr.bf16.gmra.mxu0 %v1804
        %v2005 = vpop.f32.mrf.mxu0
        %v2006 = vadd.f32 %v1850, %v2005
        %v2007 = vpop.f32.mrf.mxu0
        %v2008 = vpop.f32.mrf.mxu0
        %v2009 = vadd.f32 %v1850, %v2008
        %v2010 = vpop.f32.mrf.mxu0
        %2011 = vmatprep.mubr.bf16.mxu0 %v1807
        %2012 = vmatmul.mubr.bf16.gmra.mxu0 %v1806
        %v2013 = vpop.f32.mrf.mxu0
        %v2014 = vadd.f32 %v1850, %v2013
        %v2015 = vpop.f32.mrf.mxu0
        %v2016 = vpop.f32.mrf.mxu0
        %v2017 = vadd.f32 %v1850, %v2016
        %v2018 = vpop.f32.mrf.mxu0
        %2019 = vmatprep.mubr.bf16.mxu0 %v1809
        %2020 = vmatmul.mubr.bf16.gmra.mxu0 %v1808
        %v2021 = vpop.f32.mrf.mxu0
        %v2022 = vadd.f32 %v1850, %v2021
        %v2023 = vpop.f32.mrf.mxu0
        %v2024 = vpop.f32.mrf.mxu0
        %v2025 = vadd.f32 %v1850, %v2024
        %v2026 = vpop.f32.mrf.mxu0
        %2027 = vmatprep.mubr.bf16.mxu0 %v1811
        %2028 = vmatmul.mubr.bf16.gmra.mxu0 %v1810
        %v2029 = vpop.f32.mrf.mxu0
        %v2030 = vadd.f32 %v1850, %v2029
        %v2031 = vpop.f32.mrf.mxu0
        %v2032 = vpop.f32.mrf.mxu0
        %v2033 = vadd.f32 %v1850, %v2032
        %v2034 = vpop.f32.mrf.mxu0
        %2035 = vmatprep.mubr.bf16.mxu0 %v1813
        %2036 = vmatmul.mubr.bf16.gmra.mxu0 %v1812
        %v2037 = vpop.f32.mrf.mxu0
        %v2038 = vadd.f32 %v1850, %v2037
        %v2039 = vpop.f32.mrf.mxu0
        %v2040 = vpop.f32.mrf.mxu0
        %v2041 = vadd.f32 %v1850, %v2040
        %v2042 = vpop.f32.mrf.mxu0
        %2043 = vdwg.mxu0
        %v2044 = vmax.f32 %v1982, 0.0
        %v2045 = vmax.f32 %v1985, 0.0
        %v2046 = vmax.f32 %v1990, 0.0
        %v2047 = vmax.f32 %v1993, 0.0
        %v2048 = vmax.f32 %v1998, 0.0
        %v2049 = vmax.f32 %v2001, 0.0
        %v2050 = vmax.f32 %v2006, 0.0
        %v2051 = vmax.f32 %v2009, 0.0
        %v2052 = vmax.f32 %v2014, 0.0
        %v2053 = vmax.f32 %v2017, 0.0
        %v2054 = vmax.f32 %v2022, 0.0
        %v2055 = vmax.f32 %v2025, 0.0
        %v2056 = vmax.f32 %v2030, 0.0
        %v2057 = vmax.f32 %v2033, 0.0
        %v2058 = vmax.f32 %v2038, 0.0
        %v2059 = vmax.f32 %v2041, 0.0
        %v2060 = vpack.c.bf16 %v2045, %v2044
        %v2061 = vpack.c.bf16 %v2047, %v2046
        %v2062 = vpack.c.bf16 %v2049, %v2048
        %v2063 = vpack.c.bf16 %v2051, %v2050
        %v2064 = vpack.c.bf16 %v2053, %v2052
        %v2065 = vpack.c.bf16 %v2055, %v2054
        %v2066 = vpack.c.bf16 %v2057, %v2056
        %v2067 = vpack.c.bf16 %v2059, %v2058
        %v2068 = vld [vmem:[%s4 + $0x2] sm:$0x1]
        %v2069 = vld [vmem:[%s3] sm:$0xf]
        %v2070 = vld [vmem:[%s3 + $0x4] sm:$0xf]
        %v2071 = vld [vmem:[%s3 + $0x8] sm:$0xf]
        %v2072 = vld [vmem:[%s3 + $0xc] sm:$0xf]
        %v2073 = vld [vmem:[%s3 + $0x10] sm:$0xf]
        %v2074 = vld [vmem:[%s3 + $0x14] sm:$0xf]
        %v2075 = vld [vmem:[%s3 + $0x18] sm:$0xf]
        %v2076 = vld [vmem:[%s3 + $0x1c] sm:$0xf]
        %v2077 = vld [vmem:[%s3 + $0x20] sm:$0xf]
        %v2078 = vld [vmem:[%s3 + $0x24] sm:$0xf]
        %v2079 = vld [vmem:[%s3 + $0x28] sm:$0xf]
        %v2080 = vld [vmem:[%s3 + $0x2c] sm:$0xf]
        %v2081 = vld [vmem:[%s3 + $0x30] sm:$0xf]
        %v2082 = vld [vmem:[%s3 + $0x34] sm:$0xf]
        %v2083 = vld [vmem:[%s3 + $0x38] sm:$0xf]
        %v2084 = vld [vmem:[%s3 + $0x3c] sm:$0xf]
        %v2085 = vlaneseq
        %v2086 = vshrl.u32 %v2085, 7
        %v2087 = vsub.s32 0, %v2086
        %v2088 = vrot.slane %v2068, %v2087
        %v2105 = vunpack.c.l.b16 %v2069
        %v2106 = vunpack.c.l.b16 %v2070
        %v2107 = vunpack.c.l.b16 %v2071
        %v2108 = vunpack.c.l.b16 %v2072
        %v2109 = vunpack.c.l.b16 %v2073
        %v2110 = vunpack.c.l.b16 %v2074
        %v2111 = vunpack.c.l.b16 %v2075
        %v2112 = vunpack.c.l.b16 %v2076
        %v2113 = vunpack.c.l.b16 %v2077
        %v2114 = vunpack.c.l.b16 %v2078
        %v2115 = vunpack.c.l.b16 %v2079
        %v2116 = vunpack.c.l.b16 %v2080
        %v2117 = vunpack.c.l.b16 %v2081
        %v2118 = vunpack.c.l.b16 %v2082
        %v2119 = vunpack.c.l.b16 %v2083
        %v2120 = vunpack.c.l.b16 %v2084
        %v2121 = vpack.c.b16 %v2106, %v2105
        %v2122 = vpack.c.b16 %v2108, %v2107
        %v2123 = vpack.c.b16 %v2110, %v2109
        %v2124 = vpack.c.b16 %v2112, %v2111
        %v2125 = vpack.c.b16 %v2114, %v2113
        %v2126 = vpack.c.b16 %v2116, %v2115
        %v2127 = vpack.c.b16 %v2118, %v2117
        %v2128 = vpack.c.b16 %v2120, %v2119
        %2137 = vmatprep.subr.bf16.mxu0 0
        %2138 = vmatpush1.bf16.msra.mxu0 %v2128
        %2139 = vmatprep.subr.bf16.mxu0 0
        %2140 = vmatpush1.bf16.msra.mxu0 %v2127
        %2141 = vmatprep.subr.bf16.mxu0 0
        %2142 = vmatpush1.bf16.msra.mxu0 %v2126
        %2143 = vmatprep.subr.bf16.mxu0 0
        %2144 = vmatpush1.bf16.msra.mxu0 %v2125
        %2145 = vmatprep.subr.bf16.mxu0 0
        %2146 = vmatpush1.bf16.msra.mxu0 %v2124
        %2147 = vmatprep.subr.bf16.mxu0 0
        %2148 = vmatpush1.bf16.msra.mxu0 %v2123
        %2149 = vmatprep.subr.bf16.mxu0 0
        %2150 = vmatpush1.bf16.msra.mxu0 %v2122
        %2151 = vmatprep.subr.bf16.mxu0 0
        %2152 = vmatpush1.bf16.msra.mxu0 %v2121
        %2153 = vmatprep.subr.bf16.mxu0 0
        %2154 = vmatpush2.bf16.msra.mxu0 0
        %2155 = vmatprep.subr.bf16.mxu0 0
        %2156 = vmatpush2.bf16.msra.mxu0 0
        %2157 = vmatprep.subr.bf16.mxu0 0
        %2158 = vmatpush2.bf16.msra.mxu0 0
        %2159 = vmatprep.subr.bf16.mxu0 0
        %2160 = vmatpush2.bf16.msra.mxu0 0
        %2161 = vmatprep.subr.bf16.mxu0 0
        %2162 = vmatpush2.bf16.msra.mxu0 0
        %2163 = vmatprep.subr.bf16.mxu0 0
        %2164 = vmatpush2.bf16.msra.mxu0 0
        %2165 = vmatprep.subr.bf16.mxu0 0
        %2166 = vmatpush2.bf16.msra.mxu0 0
        %2167 = vmatprep.subr.bf16.mxu0 0
        %2168 = vmatpush2.bf16.msra.mxu0 0
        %2169 = vmatprep.mubr.bf16.mxu0 0
        %2170 = vmatmul.mubr.bf16.gmra.mxu0 %v2060
        %v2171 = vpop.f32.mrf.mxu0
        %v2172 = vadd.f32 %v2088, %v2171
        %v2173 = vpop.f32.mrf.mxu0
        %v2174 = vpop.f32.mrf.mxu0
        %v2175 = vadd.f32 %v2088, %v2174
        %v2176 = vpop.f32.mrf.mxu0
        %2177 = vmatprep.mubr.bf16.mxu0 0
        %2178 = vmatmul.mubr.bf16.gmra.mxu0 %v2061
        %v2179 = vpop.f32.mrf.mxu0
        %v2180 = vadd.f32 %v2088, %v2179
        %v2181 = vpop.f32.mrf.mxu0
        %v2182 = vpop.f32.mrf.mxu0
        %v2183 = vadd.f32 %v2088, %v2182
        %v2184 = vpop.f32.mrf.mxu0
        %2185 = vmatprep.mubr.bf16.mxu0 0
        %2186 = vmatmul.mubr.bf16.gmra.mxu0 %v2062
        %v2187 = vpop.f32.mrf.mxu0
        %v2188 = vadd.f32 %v2088, %v2187
        %v2189 = vpop.f32.mrf.mxu0
        %v2190 = vpop.f32.mrf.mxu0
        %v2191 = vadd.f32 %v2088, %v2190
        %v2192 = vpop.f32.mrf.mxu0
        %2193 = vmatprep.mubr.bf16.mxu0 0
        %2194 = vmatmul.mubr.bf16.gmra.mxu0 %v2063
        %v2195 = vpop.f32.mrf.mxu0
        %v2196 = vadd.f32 %v2088, %v2195
        %v2197 = vpop.f32.mrf.mxu0
        %v2198 = vpop.f32.mrf.mxu0
        %v2199 = vadd.f32 %v2088, %v2198
        %v2200 = vpop.f32.mrf.mxu0
        %2201 = vmatprep.mubr.bf16.mxu0 0
        %2202 = vmatmul.mubr.bf16.gmra.mxu0 %v2064
        %v2203 = vpop.f32.mrf.mxu0
        %v2204 = vadd.f32 %v2088, %v2203
        %v2205 = vpop.f32.mrf.mxu0
        %v2206 = vpop.f32.mrf.mxu0
        %v2207 = vadd.f32 %v2088, %v2206
        %v2208 = vpop.f32.mrf.mxu0
        %2209 = vmatprep.mubr.bf16.mxu0 0
        %2210 = vmatmul.mubr.bf16.gmra.mxu0 %v2065
        %v2211 = vpop.f32.mrf.mxu0
        %v2212 = vadd.f32 %v2088, %v2211
        %v2213 = vpop.f32.mrf.mxu0
        %v2214 = vpop.f32.mrf.mxu0
        %v2215 = vadd.f32 %v2088, %v2214
        %v2216 = vpop.f32.mrf.mxu0
        %2217 = vmatprep.mubr.bf16.mxu0 0
        %2218 = vmatmul.mubr.bf16.gmra.mxu0 %v2066
        %v2219 = vpop.f32.mrf.mxu0
        %v2220 = vadd.f32 %v2088, %v2219
        %v2221 = vpop.f32.mrf.mxu0
        %v2222 = vpop.f32.mrf.mxu0
        %v2223 = vadd.f32 %v2088, %v2222
        %v2224 = vpop.f32.mrf.mxu0
        %2225 = vmatprep.mubr.bf16.mxu0 0
        %2226 = vmatmul.mubr.bf16.gmra.mxu0 %v2067
        %v2227 = vpop.f32.mrf.mxu0
        %v2228 = vadd.f32 %v2088, %v2227
        %v2229 = vpop.f32.mrf.mxu0
        %v2230 = vpop.f32.mrf.mxu0
        %v2231 = vadd.f32 %v2088, %v2230
        %v2232 = vpop.f32.mrf.mxu0
        %2233 = vdwg.mxu0
        %v2234 = vlaneseq
        %v2235 = vand.u32 %v2234, 127
        %vm2236 = vcmp.lt.s32.totalorder %v2235, 8
        %v2237 = vmul.f32 %v2172, 0.5
        %v2238 = vmul.f32 %v2175, 0.5
        %v2239 = vmul.f32 %v2180, 0.5
        %v2240 = vmul.f32 %v2183, 0.5
        %v2241 = vmul.f32 %v2188, 0.5
        %v2242 = vmul.f32 %v2191, 0.5
        %v2243 = vmul.f32 %v2196, 0.5
        %v2244 = vmul.f32 %v2199, 0.5
        %v2245 = vmul.f32 %v2204, 0.5
        %v2246 = vmul.f32 %v2207, 0.5
        %v2247 = vmul.f32 %v2212, 0.5
        %v2248 = vmul.f32 %v2215, 0.5
        %v2249 = vmul.f32 %v2220, 0.5
        %v2250 = vmul.f32 %v2223, 0.5
        %v2251 = vmul.f32 %v2228, 0.5
        %v2252 = vmul.f32 %v2231, 0.5
        %v2253 = vmul.f32 %v2237, 1.442695
        %v2254 = vpow.pop %v2253
        %v2255 = vmul.f32 %v2238, 1.442695
        %v2256 = vpow.pop %v2255
        %v2257 = vmul.f32 %v2239, 1.442695
        %v2258 = vpow.pop %v2257
        %v2259 = vmul.f32 %v2240, 1.442695
        %v2260 = vpow.pop %v2259
        %v2261 = vmul.f32 %v2241, 1.442695
        %v2262 = vpow.pop %v2261
        %v2263 = vmul.f32 %v2242, 1.442695
        %v2264 = vpow.pop %v2263
        %v2265 = vmul.f32 %v2243, 1.442695
        %v2266 = vpow.pop %v2265
        %v2267 = vmul.f32 %v2244, 1.442695
        %v2268 = vpow.pop %v2267
        %v2269 = vmul.f32 %v2245, 1.442695
        %v2270 = vpow.pop %v2269
        %v2271 = vmul.f32 %v2246, 1.442695
        %v2272 = vpow.pop %v2271
        %v2273 = vmul.f32 %v2247, 1.442695
        %v2274 = vpow.pop %v2273
        %v2275 = vmul.f32 %v2248, 1.442695
        %v2276 = vpow.pop %v2275
        %v2277 = vmul.f32 %v2249, 1.442695
        %v2278 = vpow.pop %v2277
        %v2279 = vmul.f32 %v2250, 1.442695
        %v2280 = vpow.pop %v2279
        %v2281 = vmul.f32 %v2251, 1.442695
        %v2282 = vpow.pop %v2281
        %v2283 = vmul.f32 %v2252, 1.442695
        %v2284 = vpow.pop %v2283
        %v2285 = vadd.f32 %v2254, 1e-06
        %v2286 = vadd.f32 %v2256, 1e-06
        %v2287 = vadd.f32 %v2258, 1e-06
        %v2288 = vadd.f32 %v2260, 1e-06
        %v2289 = vadd.f32 %v2262, 1e-06
        %v2290 = vadd.f32 %v2264, 1e-06
        %v2291 = vadd.f32 %v2266, 1e-06
        %v2292 = vadd.f32 %v2268, 1e-06
        %v2293 = vadd.f32 %v2270, 1e-06
        %v2294 = vadd.f32 %v2272, 1e-06
        %v2295 = vadd.f32 %v2274, 1e-06
        %v2296 = vadd.f32 %v2276, 1e-06
        %v2297 = vadd.f32 %v2278, 1e-06
        %v2298 = vadd.f32 %v2280, 1e-06
        %v2299 = vadd.f32 %v2282, 1e-06
        %v2300 = vadd.f32 %v2284, 1e-06
        %v2301 = vsel %vm2236, %v2172, %v2285
        %v2302 = vsel %vm2236, %v2175, %v2286
        %v2303 = vsel %vm2236, %v2180, %v2287
        %v2304 = vsel %vm2236, %v2183, %v2288
        %v2305 = vsel %vm2236, %v2188, %v2289
        %v2306 = vsel %vm2236, %v2191, %v2290
        %v2307 = vsel %vm2236, %v2196, %v2291
        %v2308 = vsel %vm2236, %v2199, %v2292
        %v2309 = vsel %vm2236, %v2204, %v2293
        %v2310 = vsel %vm2236, %v2207, %v2294
        %v2311 = vsel %vm2236, %v2212, %v2295
        %v2312 = vsel %vm2236, %v2215, %v2296
        %v2313 = vsel %vm2236, %v2220, %v2297
        %v2314 = vsel %vm2236, %v2223, %v2298
        %v2315 = vsel %vm2236, %v2228, %v2299
        %v2316 = vsel %vm2236, %v2231, %v2300
        %vm2317 = vcmask 130048
        %2318 = vst.msk [vmem:[%s275] sm:$0xff] %vm2317, %v2301
        %2319 = vst.msk [vmem:[%s275 + $0x8] sm:$0xff] %vm2317, %v2302
        %2320 = vst.msk [vmem:[%s275 + $0x10] sm:$0xff] %vm2317, %v2303
        %2321 = vst.msk [vmem:[%s275 + $0x18] sm:$0xff] %vm2317, %v2304
        %2322 = vst.msk [vmem:[%s275 + $0x20] sm:$0xff] %vm2317, %v2305
        %2323 = vst.msk [vmem:[%s275 + $0x28] sm:$0xff] %vm2317, %v2306
        %2324 = vst.msk [vmem:[%s275 + $0x30] sm:$0xff] %vm2317, %v2307
        %2325 = vst.msk [vmem:[%s275 + $0x38] sm:$0xff] %vm2317, %v2308
        %2326 = vst.msk [vmem:[%s275 + $0x40] sm:$0xff] %vm2317, %v2309
        %2327 = vst.msk [vmem:[%s275 + $0x48] sm:$0xff] %vm2317, %v2310
        %2328 = vst.msk [vmem:[%s275 + $0x50] sm:$0xff] %vm2317, %v2311
        %2329 = vst.msk [vmem:[%s275 + $0x58] sm:$0xff] %vm2317, %v2312
        %2330 = vst.msk [vmem:[%s275 + $0x60] sm:$0xff] %vm2317, %v2313
        %2331 = vst.msk [vmem:[%s275 + $0x68] sm:$0xff] %vm2317, %v2314
        %2332 = vst.msk [vmem:[%s275 + $0x70] sm:$0xff] %vm2317, %v2315
        %2333 = vst.msk [vmem:[%s275 + $0x78] sm:$0xff] %vm2317, %v2316
        %s2334 = smul.u32 16, %s20
        %p2335 = scmp.lt.s32.totalorder %s2334, 31
        %s2336 = scalar_select %p2335, %s2334, 31
        %s2337 = smul.addr %s2336, 8
        %s2338 = scalar_lea.vmem %s5, %s2337
        // Predicated region
        $region53: #{tpu_custom_call.1} parent=39 // pred_check
          %p2339 = pneg %p148
        $region54: #{tpu_custom_call.1} parent=39 // pred_check_branch
          %2341 = sbr.rel (%p2339) target = $region56
        $region55: #{tpu_custom_call.1} parent=39 // pred_region
          %s2342 = smul.u32 16, %s20
        $region56: #{tpu_custom_call.1} parent=39 // pred_fallthru
          _
      $region40: #{tpu_custom_call.1} parent=5 // pred_fallthru
        _
      %p2343 = scmp.le.s32.totalorder 2, %s15
      // Predicated region
      $region57: #{tpu_custom_call.1} parent=5 // pred_check
        %p2344 = pneg %p2343
      $region58: #{tpu_custom_call.1} parent=5 // pred_check_branch
        %2346 = sbr.rel (%p2344) target = $region60
      $region59: #{tpu_custom_call.1} parent=5 // pred_region
        %s2347 = ssub.s32 %s15, 2
        // Predicated region
        $region61: #{tpu_custom_call.1} parent=59 // pred_check
          %p2348 = pneg %p154
        $region62: #{tpu_custom_call.1} parent=59 // pred_check_branch
          %2350 = sbr.rel (%p2348) target = $region64
        $region63: #{tpu_custom_call.1} parent=59 // pred_region
          %s2351 = smul.u32 16, %s21
          %p2352 = scmp.lt.s32.totalorder %s2351, 31
          %s2353 = scalar_select %p2352, %s2351, 31
          %s2354 = smul.addr %s2353, 8
          %s2355 = scalar_lea.vmem %s5, %s2354
        $region64: #{tpu_custom_call.1} parent=59 // pred_fallthru
          _
      $region60: #{tpu_custom_call.1} parent=5 // pred_fallthru
        _
    $region6: #{tpu_custom_call.1} parent=1 // loop_footer
      %s19 = sadd.s32 1, %s15
    $region7: #{tpu_custom_call.1} parent=1 // loop_footer_branch
      %14 = sbr.rel target = $region3
    $region8: #{tpu_custom_call.1} parent=1 // loop_exit
      _
    %2356 = vsyncpa [#allocation3], 1
    %s2357 = scalar_lea.sflag [#allocation3], 1
    %2358 = vsyncpa %s2357, 1
    %2359 = vsyncpa [#allocation5], 1

</llo_original>
